<compile_context>
chip_gen: v7x
topology: tpu7x:2x2x1
jax: 0.10.0
libtpu: 0.0.40
codegen_flags: <defaults>
</compile_context>

<pallas_src>
import math

import jax
import jax.numpy as jnp
from jax.experimental import pallas as pl
from jax.experimental.pallas import tpu as pltpu

# ---- model hyper-params (small, consistent with the PyTorch module) ----
B = 2            # batch
T = 8            # sequence length
DIM = 32         # model dim
NUM_HEADS = 4
HEAD_DIM = DIM // NUM_HEADS
MLP_HIDDEN = 64
OUT_DIM = 32
ROPE_BASE = 10.0      # RoPE default base in the module
BT = B * T


def _rope_tables(seq_len, dim, base=ROPE_BASE):
    # Matches PositionalEmbedding: pe[:,0::2]=sin(pos*div), pe[:,1::2]=cos(pos*div);
    # RoPE.forward reads sin = pe[:, 0::2], cos = pe[:, 1::2].
    pos = jnp.arange(seq_len, dtype=jnp.float32)[:, None]                                  # (T,1)
    div = jnp.exp(-math.log(base) * jnp.arange(0, dim, 2, dtype=jnp.float32) / dim)        # (dim/2,)
    ang = pos * div[None, :]                                                               # (T, dim/2)
    return jnp.sin(ang), jnp.cos(ang)


def transformer_block_kernel(x_ref, mask_ref, rope_ref, hmask_ref,
                             wqkv_ref, wo_ref, wfcg_ref, wproj_ref,
                             wskip_ref, bskip_ref, out_ref):
    f32 = jnp.float32
    x = x_ref[...]                     # (BT, DIM)
    mask = mask_ref[...]               # (BT, BT) block-diagonal causal mask

    # --- fused projection: [Wq*scale | Wk | Wv | roll(Wq*scale) | roll(Wk)] in one MXU op ---
    qkv = jnp.dot(x, wqkv_ref[...], preferred_element_type=f32)      # (BT, 5*DIM)
    qkv = qkv * rope_ref[...]          # per-segment cos / cos / 1 / signed-sin / signed-sin

    q = qkv[:, 0 * DIM:1 * DIM] + qkv[:, 3 * DIM:4 * DIM]            # RoPE(q) (scale folded in Wq)
    k = qkv[:, 1 * DIM:2 * DIM] + qkv[:, 4 * DIM:5 * DIM]            # RoPE(k)
    v = qkv[:, 2 * DIM:3 * DIM]

    # --- per-head attention via disjoint 0/1 lane masks (no head slicing, no transposes) ---
    ctx = jnp.zeros_like(x)                                          # (BT, DIM)
    for h in range(NUM_HEADS):
        hm = hmask_ref[h]                                            # (1, DIM) 0/1 mask
        s = jax.lax.dot_general(q, k * hm, (((1,), (1,)), ((), ())),
                                preferred_element_type=f32) + mask   # (BT, BT)
        s = s - jnp.max(s, axis=-1, keepdims=True)
        e = jnp.exp(s)
        p = e * pl.reciprocal(jnp.sum(e, axis=-1, keepdims=True), approx=True)
        # only head-h lanes of (v * hm) are nonzero, so summing over heads == concat of heads
        ctx = ctx + jnp.dot(p, v * hm, preferred_element_type=f32)

    attn = jnp.dot(ctx, wo_ref[...], preferred_element_type=f32)     # (BT, DIM)
    h_res = x + attn

    # --- skip Linear (with bias) ---
    skip = jnp.dot(h_res, wskip_ref[...], preferred_element_type=f32) + bskip_ref[...]

    # --- SwiGLU MLP with fused fc/gate weight (128-lane-wide output) ---
    fcg = jnp.dot(h_res, wfcg_ref[...], preferred_element_type=f32)  # (BT, 2*MLP_HIDDEN)
    fc = fcg[:, :MLP_HIDDEN]
    gate = fcg[:, MLP_HIDDEN:]
    hidden = fc * (gate * jax.lax.logistic(gate))                    # fc * silu(gate)
    mlp = jnp.dot(hidden, wproj_ref[...], preferred_element_type=f32)

    out_ref[...] = skip + mlp


def transformer_block(x, mask, params):
    """x: (B, T, DIM); mask: (T, T) additive mask; weights stored as (in_features, out_features)."""
    wq, wk, wv, wo, wfc, wgate, wproj, wskip, bskip = params
    scale = 1.0 / math.sqrt(HEAD_DIM)
    half = DIM // 2

    # Fold 1/sqrt(head_dim) into Wq and the RoPE rotation into extra (rolled) weight copies.
    wq_s = wq * scale
    wqkv = jnp.concatenate([wq_s, wk, wv,
                            jnp.roll(wq_s, half, axis=1),
                            jnp.roll(wk, half, axis=1)], axis=1)      # (DIM, 5*DIM)

    # Full-width RoPE multiplier table, one row per flattened (b, t) position.
    sin, cos = _rope_tables(T, DIM)                                   # (T, DIM/2)
    cos_f = jnp.concatenate([cos, cos], axis=-1)                      # (T, DIM)
    sin_s = jnp.concatenate([-sin, sin], axis=-1)                     # (T, DIM) signed sin
    ones = jnp.ones((T, DIM), jnp.float32)
    rope_tab = jnp.tile(jnp.concatenate([cos_f, cos_f, ones, sin_s, sin_s], axis=-1),
                        (B, 1))                                       # (BT, 5*DIM)

    # Fused fc/gate weight -> lane-dense (BT, 128) matmul output.
    wfcg = jnp.concatenate([wfc, wgate], axis=1)                      # (DIM, 2*MLP_HIDDEN)

    # Block-diagonal additive mask so flattened rows only attend within their own batch element.
    bid = jnp.repeat(jnp.arange(B), T)                                # (BT,)
    mask_full = jnp.where(bid[:, None] == bid[None, :],
                          jnp.tile(mask, (B, B)), jnp.float32(-1e9))  # (BT, BT)

    # Per-head 0/1 lane masks.
    head_of_lane = jnp.arange(DIM) // HEAD_DIM
    hmask = (head_of_lane[None, None, :] ==
             jnp.arange(NUM_HEADS)[:, None, None]).astype(jnp.float32)  # (NUM_HEADS, 1, DIM)

    x2 = x.reshape(BT, DIM)
    bskip2 = bskip.reshape(1, OUT_DIM)

    vmem = pl.BlockSpec(memory_space=pltpu.MemorySpace.VMEM)
    out2 = pl.pallas_call(
        transformer_block_kernel,
        out_shape=jax.ShapeDtypeStruct((BT, OUT_DIM), jnp.float32),
        in_specs=[vmem] * 10,
        out_specs=vmem,
    )(x2, mask_full, rope_tab, hmask, wqkv, wo, wfcg, wproj, wskip, bskip2)
    return out2.reshape(B, T, OUT_DIM)


def reference_block(x, mask, params):
    """Pure-JAX reference replicating the PyTorch forward exactly."""
    wq, wk, wv, wo, wfc, wgate, wproj, wskip, bskip = params
    sin, cos = _rope_tables(T, DIM)

    def rope(z):
        half = z.shape[-1] // 2
        z1, z2 = z[..., :half], z[..., half:]
        return jnp.concatenate([z1 * cos - z2 * sin, z1 * sin + z2 * cos], axis=-1)

    q = rope(x @ wq)
    k = rope(x @ wk)
    v = x @ wv
    qh = q.reshape(B, T, NUM_HEADS, HEAD_DIM).transpose(0, 2, 1, 3)
    kh = k.reshape(B, T, NUM_HEADS, HEAD_DIM).transpose(0, 2, 1, 3)
    vh = v.reshape(B, T, NUM_HEADS, HEAD_DIM).transpose(0, 2, 1, 3)
    scores = jnp.einsum("bhqd,bhkd->bhqk", qh, kh) / math.sqrt(HEAD_DIM)
    scores = scores + mask
    p = jax.nn.softmax(scores, axis=-1)
    o = jnp.einsum("bhqk,bhkd->bhqd", p, vh).transpose(0, 2, 1, 3).reshape(B, T, DIM)
    attn = o @ wo
    h = x + attn
    skip = h @ wskip + bskip
    mlp = ((h @ wfc) * jax.nn.silu(h @ wgate)) @ wproj
    return skip + mlp


if __name__ == "__main__":
    key = jax.random.PRNGKey(0)
    keys = jax.random.split(key, 10)
    wscale = 0.05
    # weights stored as (in_features, out_features)
    wq = jax.random.normal(keys[0], (DIM, DIM), jnp.float32) * wscale
    wk = jax.random.normal(keys[1], (DIM, DIM), jnp.float32) * wscale
    wv = jax.random.normal(keys[2], (DIM, DIM), jnp.float32) * wscale
    wo = jax.random.normal(keys[3], (DIM, DIM), jnp.float32) * wscale
    wfc = jax.random.normal(keys[4], (DIM, MLP_HIDDEN), jnp.float32) * wscale
    wgate = jax.random.normal(keys[5], (DIM, MLP_HIDDEN), jnp.float32) * wscale
    wproj = jax.random.normal(keys[6], (MLP_HIDDEN, OUT_DIM), jnp.float32) * wscale
    wskip = jax.random.normal(keys[7], (DIM, OUT_DIM), jnp.float32) * wscale
    bskip = jax.random.normal(keys[8], (OUT_DIM,), jnp.float32) * wscale
    params = (wq, wk, wv, wo, wfc, wgate, wproj, wskip, bskip)

    x = jax.random.normal(keys[9], (B, T, DIM), jnp.float32)
    # causal additive mask (like the PyTorch `mask` argument)
    causal = jnp.tril(jnp.ones((T, T), jnp.float32))
    mask = jnp.where(causal == 1.0, 0.0, -1e9).astype(jnp.float32)

    out = transformer_block(x, mask, params)
    out = jax.block_until_ready(out)

    ref = reference_block(x, mask, params)
    assert out.shape == (B, T, OUT_DIM)
    # tolerance slightly above 1e-4 solely because of pl.reciprocal(approx=True) in the softmax
    assert jnp.allclose(out, ref, atol=5e-4, rtol=5e-4), "mismatch vs reference"
    print("KERNEL_OK")
</pallas_src>

<mosaic_0001>
module attributes {stable_mosaic.version = 11 : i64} {
  func.func @transformer_block_kernel(%arg0: memref<16x32xf32, #tpu.memory_space<vmem>>, %arg1: memref<16x16xf32, #tpu.memory_space<vmem>>, %arg2: memref<16x160xf32, #tpu.memory_space<vmem>>, %arg3: memref<4x1x32xf32, #tpu.memory_space<vmem>>, %arg4: memref<32x160xf32, #tpu.memory_space<vmem>>, %arg5: memref<32x32xf32, #tpu.memory_space<vmem>>, %arg6: memref<32x128xf32, #tpu.memory_space<vmem>>, %arg7: memref<64x32xf32, #tpu.memory_space<vmem>>, %arg8: memref<32x32xf32, #tpu.memory_space<vmem>>, %arg9: memref<1x32xf32, #tpu.memory_space<vmem>>, %arg10: memref<16x32xf32, #tpu.memory_space<vmem>>) attributes {dimension_semantics = [], scalar_prefetch = 0 : i64, scratch_operands = 0 : i64, tpu.core_type = #tpu.core_type<tc>} {
    %c0 = arith.constant 0 : index
    %c0_0 = arith.constant 0 : index
    %0 = vector.load %arg0[%c0, %c0_0] : memref<16x32xf32, #tpu.memory_space<vmem>>, vector<16x32xf32>
    %c0_1 = arith.constant 0 : index
    %c0_2 = arith.constant 0 : index
    %1 = vector.load %arg1[%c0_1, %c0_2] : memref<16x16xf32, #tpu.memory_space<vmem>>, vector<16x16xf32>
    %c0_3 = arith.constant 0 : index
    %c0_4 = arith.constant 0 : index
    %2 = vector.load %arg4[%c0_3, %c0_4] : memref<32x160xf32, #tpu.memory_space<vmem>>, vector<32x160xf32>
    %cst = arith.constant dense<0.000000e+00> : vector<16x160xf32>
    %3 = tpu.matmul %0, %2, %cst {dimension_numbers = #tpu.dot_dimension_numbers<[1], [0], [0], [1], [0, 0, 1, 1], [], []>} : vector<16x32xf32>, vector<32x160xf32>, vector<16x160xf32> -> vector<16x160xf32>
    %c0_5 = arith.constant 0 : index
    %c0_6 = arith.constant 0 : index
    %4 = vector.load %arg2[%c0_5, %c0_6] : memref<16x160xf32, #tpu.memory_space<vmem>>, vector<16x160xf32>
    %5 = arith.mulf %3, %4 : vector<16x160xf32>
    %6 = vector.extract_strided_slice %5 {offsets = [0, 0], sizes = [16, 32], strides = [1, 1]} : vector<16x160xf32> to vector<16x32xf32>
    %7 = vector.extract_strided_slice %5 {offsets = [0, 96], sizes = [16, 32], strides = [1, 1]} : vector<16x160xf32> to vector<16x32xf32>
    %8 = arith.addf %6, %7 : vector<16x32xf32>
    %9 = vector.extract_strided_slice %5 {offsets = [0, 32], sizes = [16, 32], strides = [1, 1]} : vector<16x160xf32> to vector<16x32xf32>
    %10 = vector.extract_strided_slice %5 {offsets = [0, 128], sizes = [16, 32], strides = [1, 1]} : vector<16x160xf32> to vector<16x32xf32>
    %11 = arith.addf %9, %10 : vector<16x32xf32>
    %12 = vector.extract_strided_slice %5 {offsets = [0, 64], sizes = [16, 32], strides = [1, 1]} : vector<16x160xf32> to vector<16x32xf32>
    %cst_7 = arith.constant 0.000000e+00 : f32
    %13 = vector.broadcast %cst_7 : f32 to vector<16x32xf32>
    %c0_8 = arith.constant 0 : index
    %c0_9 = arith.constant 0 : index
    %c0_10 = arith.constant 0 : index
    %14 = vector.load %arg3[%c0_8, %c0_9, %c0_10] : memref<4x1x32xf32, #tpu.memory_space<vmem>>, vector<1x1x32xf32>
    %15 = vector.shape_cast %14 : vector<1x1x32xf32> to vector<1x32xf32>
    %16 = vector.broadcast %15 : vector<1x32xf32> to vector<16x32xf32>
    %17 = arith.mulf %11, %16 : vector<16x32xf32>
    %cst_11 = arith.constant dense<0.000000e+00> : vector<16x16xf32>
    %18 = tpu.matmul %8, %17, %cst_11 {dimension_numbers = #tpu.dot_dimension_numbers<[1], [1], [0], [0], [0, 0, 1, 0], [], []>} : vector<16x32xf32>, vector<16x32xf32>, vector<16x16xf32> -> vector<16x16xf32>
    %19 = arith.addf %18, %1 : vector<16x16xf32>
    %cst_12 = arith.constant dense<0xFF800000> : vector<16xf32>
    %20 = vector.multi_reduction <maximumf>, %19, %cst_12 [1] : vector<16x16xf32> to vector<16xf32>
    %21 = vector.shape_cast %20 : vector<16xf32> to vector<16x1xf32>
    %22 = vector.broadcast %21 : vector<16x1xf32> to vector<16x16xf32>
    %23 = arith.subf %19, %22 : vector<16x16xf32>
    %24 = math.exp %23 : vector<16x16xf32>
    %cst_13 = arith.constant dense<0.000000e+00> : vector<16xf32>
    %25 = vector.multi_reduction <add>, %24, %cst_13 [1] : vector<16x16xf32> to vector<16xf32>
    %26 = vector.shape_cast %25 : vector<16xf32> to vector<16x1xf32>
    %27 = tpu.reciprocal %26 {approx = true} : vector<16x1xf32> -> vector<16x1xf32>
    %28 = vector.broadcast %27 : vector<16x1xf32> to vector<16x16xf32>
    %29 = arith.mulf %24, %28 : vector<16x16xf32>
    %30 = vector.broadcast %15 : vector<1x32xf32> to vector<16x32xf32>
    %31 = arith.mulf %12, %30 : vector<16x32xf32>
    %cst_14 = arith.constant dense<0.000000e+00> : vector<16x32xf32>
    %32 = tpu.matmul %29, %31, %cst_14 {dimension_numbers = #tpu.dot_dimension_numbers<[1], [0], [0], [1], [0, 0, 1, 1], [], []>} : vector<16x16xf32>, vector<16x32xf32>, vector<16x32xf32> -> vector<16x32xf32>
    %33 = arith.addf %13, %32 : vector<16x32xf32>
    %c1 = arith.constant 1 : index
    %c0_15 = arith.constant 0 : index
    %c0_16 = arith.constant 0 : index
    %34 = vector.load %arg3[%c1, %c0_15, %c0_16] : memref<4x1x32xf32, #tpu.memory_space<vmem>>, vector<1x1x32xf32>
    %35 = vector.shape_cast %34 : vector<1x1x32xf32> to vector<1x32xf32>
    %36 = vector.broadcast %35 : vector<1x32xf32> to vector<16x32xf32>
    %37 = arith.mulf %11, %36 : vector<16x32xf32>
    %cst_17 = arith.constant dense<0.000000e+00> : vector<16x16xf32>
    %38 = tpu.matmul %8, %37, %cst_17 {dimension_numbers = #tpu.dot_dimension_numbers<[1], [1], [0], [0], [0, 0, 1, 0], [], []>} : vector<16x32xf32>, vector<16x32xf32>, vector<16x16xf32> -> vector<16x16xf32>
    %39 = arith.addf %38, %1 : vector<16x16xf32>
    %cst_18 = arith.constant dense<0xFF800000> : vector<16xf32>
    %40 = vector.multi_reduction <maximumf>, %39, %cst_18 [1] : vector<16x16xf32> to vector<16xf32>
    %41 = vector.shape_cast %40 : vector<16xf32> to vector<16x1xf32>
    %42 = vector.broadcast %41 : vector<16x1xf32> to vector<16x16xf32>
    %43 = arith.subf %39, %42 : vector<16x16xf32>
    %44 = math.exp %43 : vector<16x16xf32>
    %cst_19 = arith.constant dense<0.000000e+00> : vector<16xf32>
    %45 = vector.multi_reduction <add>, %44, %cst_19 [1] : vector<16x16xf32> to vector<16xf32>
    %46 = vector.shape_cast %45 : vector<16xf32> to vector<16x1xf32>
    %47 = tpu.reciprocal %46 {approx = true} : vector<16x1xf32> -> vector<16x1xf32>
    %48 = vector.broadcast %47 : vector<16x1xf32> to vector<16x16xf32>
    %49 = arith.mulf %44, %48 : vector<16x16xf32>
    %50 = vector.broadcast %35 : vector<1x32xf32> to vector<16x32xf32>
    %51 = arith.mulf %12, %50 : vector<16x32xf32>
    %cst_20 = arith.constant dense<0.000000e+00> : vector<16x32xf32>
    %52 = tpu.matmul %49, %51, %cst_20 {dimension_numbers = #tpu.dot_dimension_numbers<[1], [0], [0], [1], [0, 0, 1, 1], [], []>} : vector<16x16xf32>, vector<16x32xf32>, vector<16x32xf32> -> vector<16x32xf32>
    %53 = arith.addf %33, %52 : vector<16x32xf32>
    %c2 = arith.constant 2 : index
    %c0_21 = arith.constant 0 : index
    %c0_22 = arith.constant 0 : index
    %54 = vector.load %arg3[%c2, %c0_21, %c0_22] : memref<4x1x32xf32, #tpu.memory_space<vmem>>, vector<1x1x32xf32>
    %55 = vector.shape_cast %54 : vector<1x1x32xf32> to vector<1x32xf32>
    %56 = vector.broadcast %55 : vector<1x32xf32> to vector<16x32xf32>
    %57 = arith.mulf %11, %56 : vector<16x32xf32>
    %cst_23 = arith.constant dense<0.000000e+00> : vector<16x16xf32>
    %58 = tpu.matmul %8, %57, %cst_23 {dimension_numbers = #tpu.dot_dimension_numbers<[1], [1], [0], [0], [0, 0, 1, 0], [], []>} : vector<16x32xf32>, vector<16x32xf32>, vector<16x16xf32> -> vector<16x16xf32>
    %59 = arith.addf %58, %1 : vector<16x16xf32>
    %cst_24 = arith.constant dense<0xFF800000> : vector<16xf32>
    %60 = vector.multi_reduction <maximumf>, %59, %cst_24 [1] : vector<16x16xf32> to vector<16xf32>
    %61 = vector.shape_cast %60 : vector<16xf32> to vector<16x1xf32>
    %62 = vector.broadcast %61 : vector<16x1xf32> to vector<16x16xf32>
    %63 = arith.subf %59, %62 : vector<16x16xf32>
    %64 = math.exp %63 : vector<16x16xf32>
    %cst_25 = arith.constant dense<0.000000e+00> : vector<16xf32>
    %65 = vector.multi_reduction <add>, %64, %cst_25 [1] : vector<16x16xf32> to vector<16xf32>
    %66 = vector.shape_cast %65 : vector<16xf32> to vector<16x1xf32>
    %67 = tpu.reciprocal %66 {approx = true} : vector<16x1xf32> -> vector<16x1xf32>
    %68 = vector.broadcast %67 : vector<16x1xf32> to vector<16x16xf32>
    %69 = arith.mulf %64, %68 : vector<16x16xf32>
    %70 = vector.broadcast %55 : vector<1x32xf32> to vector<16x32xf32>
    %71 = arith.mulf %12, %70 : vector<16x32xf32>
    %cst_26 = arith.constant dense<0.000000e+00> : vector<16x32xf32>
    %72 = tpu.matmul %69, %71, %cst_26 {dimension_numbers = #tpu.dot_dimension_numbers<[1], [0], [0], [1], [0, 0, 1, 1], [], []>} : vector<16x16xf32>, vector<16x32xf32>, vector<16x32xf32> -> vector<16x32xf32>
    %73 = arith.addf %53, %72 : vector<16x32xf32>
    %c3 = arith.constant 3 : index
    %c0_27 = arith.constant 0 : index
    %c0_28 = arith.constant 0 : index
    %74 = vector.load %arg3[%c3, %c0_27, %c0_28] : memref<4x1x32xf32, #tpu.memory_space<vmem>>, vector<1x1x32xf32>
    %75 = vector.shape_cast %74 : vector<1x1x32xf32> to vector<1x32xf32>
    %76 = vector.broadcast %75 : vector<1x32xf32> to vector<16x32xf32>
    %77 = arith.mulf %11, %76 : vector<16x32xf32>
    %cst_29 = arith.constant dense<0.000000e+00> : vector<16x16xf32>
    %78 = tpu.matmul %8, %77, %cst_29 {dimension_numbers = #tpu.dot_dimension_numbers<[1], [1], [0], [0], [0, 0, 1, 0], [], []>} : vector<16x32xf32>, vector<16x32xf32>, vector<16x16xf32> -> vector<16x16xf32>
    %79 = arith.addf %78, %1 : vector<16x16xf32>
    %cst_30 = arith.constant dense<0xFF800000> : vector<16xf32>
    %80 = vector.multi_reduction <maximumf>, %79, %cst_30 [1] : vector<16x16xf32> to vector<16xf32>
    %81 = vector.shape_cast %80 : vector<16xf32> to vector<16x1xf32>
    %82 = vector.broadcast %81 : vector<16x1xf32> to vector<16x16xf32>
    %83 = arith.subf %79, %82 : vector<16x16xf32>
    %84 = math.exp %83 : vector<16x16xf32>
    %cst_31 = arith.constant dense<0.000000e+00> : vector<16xf32>
    %85 = vector.multi_reduction <add>, %84, %cst_31 [1] : vector<16x16xf32> to vector<16xf32>
    %86 = vector.shape_cast %85 : vector<16xf32> to vector<16x1xf32>
    %87 = tpu.reciprocal %86 {approx = true} : vector<16x1xf32> -> vector<16x1xf32>
    %88 = vector.broadcast %87 : vector<16x1xf32> to vector<16x16xf32>
    %89 = arith.mulf %84, %88 : vector<16x16xf32>
    %90 = vector.broadcast %75 : vector<1x32xf32> to vector<16x32xf32>
    %91 = arith.mulf %12, %90 : vector<16x32xf32>
    %cst_32 = arith.constant dense<0.000000e+00> : vector<16x32xf32>
    %92 = tpu.matmul %89, %91, %cst_32 {dimension_numbers = #tpu.dot_dimension_numbers<[1], [0], [0], [1], [0, 0, 1, 1], [], []>} : vector<16x16xf32>, vector<16x32xf32>, vector<16x32xf32> -> vector<16x32xf32>
    %93 = arith.addf %73, %92 : vector<16x32xf32>
    %c0_33 = arith.constant 0 : index
    %c0_34 = arith.constant 0 : index
    %94 = vector.load %arg5[%c0_33, %c0_34] : memref<32x32xf32, #tpu.memory_space<vmem>>, vector<32x32xf32>
    %cst_35 = arith.constant dense<0.000000e+00> : vector<16x32xf32>
    %95 = tpu.matmul %93, %94, %cst_35 {dimension_numbers = #tpu.dot_dimension_numbers<[1], [0], [0], [1], [0, 0, 1, 1], [], []>} : vector<16x32xf32>, vector<32x32xf32>, vector<16x32xf32> -> vector<16x32xf32>
    %96 = arith.addf %0, %95 : vector<16x32xf32>
    %c0_36 = arith.constant 0 : index
    %c0_37 = arith.constant 0 : index
    %97 = vector.load %arg8[%c0_36, %c0_37] : memref<32x32xf32, #tpu.memory_space<vmem>>, vector<32x32xf32>
    %cst_38 = arith.constant dense<0.000000e+00> : vector<16x32xf32>
    %98 = tpu.matmul %96, %97, %cst_38 {dimension_numbers = #tpu.dot_dimension_numbers<[1], [0], [0], [1], [0, 0, 1, 1], [], []>} : vector<16x32xf32>, vector<32x32xf32>, vector<16x32xf32> -> vector<16x32xf32>
    %c0_39 = arith.constant 0 : index
    %c0_40 = arith.constant 0 : index
    %99 = vector.load %arg9[%c0_39, %c0_40] : memref<1x32xf32, #tpu.memory_space<vmem>>, vector<1x32xf32>
    %100 = vector.broadcast %99 : vector<1x32xf32> to vector<16x32xf32>
    %101 = arith.addf %98, %100 : vector<16x32xf32>
    %c0_41 = arith.constant 0 : index
    %c0_42 = arith.constant 0 : index
    %102 = vector.load %arg6[%c0_41, %c0_42] : memref<32x128xf32, #tpu.memory_space<vmem>>, vector<32x128xf32>
    %cst_43 = arith.constant dense<0.000000e+00> : vector<16x128xf32>
    %103 = tpu.matmul %96, %102, %cst_43 {dimension_numbers = #tpu.dot_dimension_numbers<[1], [0], [0], [1], [0, 0, 1, 1], [], []>} : vector<16x32xf32>, vector<32x128xf32>, vector<16x128xf32> -> vector<16x128xf32>
    %104 = vector.extract_strided_slice %103 {offsets = [0, 0], sizes = [16, 64], strides = [1, 1]} : vector<16x128xf32> to vector<16x64xf32>
    %105 = vector.extract_strided_slice %103 {offsets = [0, 64], sizes = [16, 64], strides = [1, 1]} : vector<16x128xf32> to vector<16x64xf32>
    %106 = arith.negf %105 : vector<16x64xf32>
    %107 = math.exp %106 : vector<16x64xf32>
    %cst_44 = arith.constant 1.000000e+00 : f32
    %108 = vector.broadcast %cst_44 : f32 to vector<16x64xf32>
    %109 = arith.addf %108, %107 : vector<16x64xf32>
    %110 = arith.divf %108, %109 : vector<16x64xf32>
    %111 = arith.mulf %105, %110 : vector<16x64xf32>
    %112 = arith.mulf %104, %111 : vector<16x64xf32>
    %c0_45 = arith.constant 0 : index
    %c0_46 = arith.constant 0 : index
    %113 = vector.load %arg7[%c0_45, %c0_46] : memref<64x32xf32, #tpu.memory_space<vmem>>, vector<64x32xf32>
    %cst_47 = arith.constant dense<0.000000e+00> : vector<16x32xf32>
    %114 = tpu.matmul %112, %113, %cst_47 {dimension_numbers = #tpu.dot_dimension_numbers<[1], [0], [0], [1], [0, 0, 1, 1], [], []>} : vector<16x64xf32>, vector<64x32xf32>, vector<16x32xf32> -> vector<16x32xf32>
    %115 = arith.addf %101, %114 : vector<16x32xf32>
    %c0_48 = arith.constant 0 : index
    %c0_49 = arith.constant 0 : index
    %116 = vector.load %arg10[%c0_48, %c0_49] : memref<16x32xf32, #tpu.memory_space<vmem>>, vector<16x32xf32>
    tpu.vector_store %arg10[%c0_48, %c0_49], %115 {strides = array<i32>} : memref<16x32xf32, #tpu.memory_space<vmem>>, vector<16x32xf32>,
    return
  }
}

</mosaic_0001>

<llo_original>
// kernel: tpu_custom_call.1
$region0: #{tpu_custom_call.1}
  #allocation0 [shape = 'u32[]', space=smem, size = 0x4, offset = 0x4, fixed_abs, tag = 'smem constant byte address 0x4 - core index']
  #allocation1 [shape = 'u32[144,128]{1,0:T(1,128)}', space=vmem, size = 0x12000, scoped, tag = 'internal scratch']
  %s0 = inlined_call_operand.hbm [shape: f32[16,32], index: 0, kind: input, shape index: {}]
  %s1 = inlined_call_operand.hbm [shape: f32[16,16], index: 1, kind: input, shape index: {}]
  %s2 = inlined_call_operand.vmem [shape: f32[16,160], index: 2, kind: input, shape index: {}]
  %s3 = inlined_call_operand.vmem [shape: f32[4,1,32], index: 3, kind: input, shape index: {}]
  %s4 = inlined_call_operand.vmem [shape: f32[32,160], index: 4, kind: input, shape index: {}]
  %s5 = inlined_call_operand.hbm [shape: f32[32,32], index: 5, kind: input, shape index: {}]
  %s6 = inlined_call_operand.hbm [shape: f32[32,128], index: 6, kind: input, shape index: {}]
  %s7 = inlined_call_operand.vmem [shape: f32[64,32], index: 7, kind: input, shape index: {}]
  %s8 = inlined_call_operand.hbm [shape: f32[32,32], index: 8, kind: input, shape index: {}]
  %s9 = inlined_call_operand.vmem [shape: f32[1,32], index: 9, kind: input, shape index: {}]
  %s10 = inlined_call_operand.hbm [shape: f32[16,32], index: 10, kind: output, shape index: {}]
  %s11 = sld [smem:[#allocation0]]
  $region70: #{tpu_custom_call.1} parent=0
    _
  %s13 = ssub.s32 1, %s11
  %s14 = scalar_select 0, %s13, %s11
  $region1: #{tpu_custom_call.1} parent=0
    #allocation2 [shape = 'u8[8192]{0}', space=vmem, size = 0x2000, scoped, tag = 'input window, operand 0, single buffered']
    #allocation3 [shape = 's32[1]{0}', space=sflag, size = 0x4, scoped, tag = 'scoped memory for tpu_custom_call.1']
    #allocation4 [shape = 's32[1]{0}', space=sflag, size = 0x4, scoped, tag = 'scoped memory for tpu_custom_call.1']
    #allocation5 [shape = 'u8[8192]{0}', space=vmem, size = 0x2000, scoped, tag = 'input window, operand 1, single buffered']
    #allocation6 [shape = 's32[1]{0}', space=sflag, size = 0x4, scoped, tag = 'scoped memory for tpu_custom_call.1']
    #allocation7 [shape = 'u8[16384]{0}', space=vmem, size = 0x4000, scoped, tag = 'input window, operand 5, single buffered']
    #allocation8 [shape = 'u8[16384]{0}', space=vmem, size = 0x4000, scoped, tag = 'input window, operand 6, single buffered']
    #allocation9 [shape = 's32[1]{0}', space=sflag, size = 0x4, scoped, tag = 'scoped memory for tpu_custom_call.1']
    #allocation10 [shape = 'u8[16384]{0}', space=vmem, size = 0x4000, scoped, tag = 'input window, operand 8, single buffered']
    #allocation11 [shape = 'u8[8192]{0}', space=vmem, size = 0x2000, scoped, tag = 'output window, operand 0, single buffered']
    %15 = vsyncpa [#allocation3], 0
    %16 = vsyncpa [#allocation6], 0
    %17 = vsyncpa [#allocation9], 0
    %18 = vsyncpa [#allocation4], 0
    // Predicated region
    $region2: #{tpu_custom_call.1} parent=1 // pred_check
      _
    $region3: #{tpu_custom_call.1} parent=1 // pred_check_branch
      %20 = sbr.rel (0) target = $region5
    $region4: #{tpu_custom_call.1} parent=1 // pred_region
      %s22 = ssub.s32 256, 256
      %23 = vsyncadd [#allocation3], %s22
      %s24 = sshll.u32 [#allocation2], 4
      %s25 = int_to_ptr.vmem [resolvable:$true] %s24
      %30 = dma.hbm_to_vmem [thread:$0]  %s0, 256, %s25, [#allocation3], 128, 128, 8
    $region5: #{tpu_custom_call.1} parent=1 // pred_fallthru
      _
    // Predicated region
    $region6: #{tpu_custom_call.1} parent=1 // pred_check
      _
    $region7: #{tpu_custom_call.1} parent=1 // pred_check_branch
      %32 = sbr.rel (0) target = $region9
    $region8: #{tpu_custom_call.1} parent=1 // pred_region
      %s34 = ssub.s32 256, 256
      %35 = vsyncadd [#allocation6], %s34
      %s36 = sshll.u32 [#allocation5], 4
      %s37 = int_to_ptr.vmem [resolvable:$true] %s36
      %42 = dma.hbm_to_vmem [thread:$0]  %s1, 256, %s37, [#allocation6], 128, 128, 8
    $region9: #{tpu_custom_call.1} parent=1 // pred_fallthru
      _
    // Predicated region
    $region10: #{tpu_custom_call.1} parent=1 // pred_check
      _
    $region11: #{tpu_custom_call.1} parent=1 // pred_check_branch
      %44 = sbr.rel (0) target = $region13
    $region12: #{tpu_custom_call.1} parent=1 // pred_region
      _
    $region13: #{tpu_custom_call.1} parent=1 // pred_fallthru
      _
    // Predicated region
    $region14: #{tpu_custom_call.1} parent=1 // pred_check
      _
    $region15: #{tpu_custom_call.1} parent=1 // pred_check_branch
      %46 = sbr.rel (0) target = $region17
    $region16: #{tpu_custom_call.1} parent=1 // pred_region
      _
    $region17: #{tpu_custom_call.1} parent=1 // pred_fallthru
      _
    // Predicated region
    $region18: #{tpu_custom_call.1} parent=1 // pred_check
      _
    $region19: #{tpu_custom_call.1} parent=1 // pred_check_branch
      %48 = sbr.rel (0) target = $region21
    $region20: #{tpu_custom_call.1} parent=1 // pred_region
      _
    $region21: #{tpu_custom_call.1} parent=1 // pred_fallthru
      _
    // Predicated region
    $region22: #{tpu_custom_call.1} parent=1 // pred_check
      _
    $region23: #{tpu_custom_call.1} parent=1 // pred_check_branch
      %50 = sbr.rel (0) target = $region25
    $region24: #{tpu_custom_call.1} parent=1 // pred_region
      %s52 = ssub.s32 512, 512
      %53 = vsyncadd [#allocation6], %s52
      %s54 = sshll.u32 [#allocation7], 4
      %s55 = int_to_ptr.vmem [resolvable:$true] %s54
      %60 = dma.hbm_to_vmem [thread:$0]  %s5, 512, %s55, [#allocation6], 128, 128, 8
    $region25: #{tpu_custom_call.1} parent=1 // pred_fallthru
      _
    // Predicated region
    $region26: #{tpu_custom_call.1} parent=1 // pred_check
      _
    $region27: #{tpu_custom_call.1} parent=1 // pred_check_branch
      %62 = sbr.rel (0) target = $region29
    $region28: #{tpu_custom_call.1} parent=1 // pred_region
      %s64 = ssub.s32 512, 512
      %65 = vsyncadd [#allocation9], %s64
      %s66 = sshll.u32 [#allocation8], 4
      %s67 = int_to_ptr.vmem [resolvable:$true] %s66
      %72 = dma.hbm_to_vmem [thread:$0]  %s6, 512, %s67, [#allocation9], 128, 128, 8
    $region29: #{tpu_custom_call.1} parent=1 // pred_fallthru
      _
    // Predicated region
    $region30: #{tpu_custom_call.1} parent=1 // pred_check
      _
    $region31: #{tpu_custom_call.1} parent=1 // pred_check_branch
      %74 = sbr.rel (0) target = $region33
    $region32: #{tpu_custom_call.1} parent=1 // pred_region
      _
    $region33: #{tpu_custom_call.1} parent=1 // pred_fallthru
      _
    // Predicated region
    $region34: #{tpu_custom_call.1} parent=1 // pred_check
      _
    $region35: #{tpu_custom_call.1} parent=1 // pred_check_branch
      %76 = sbr.rel (0) target = $region37
    $region36: #{tpu_custom_call.1} parent=1 // pred_region
      %s78 = ssub.s32 512, 512
      %79 = vsyncadd [#allocation9], %s78
      %s80 = sshll.u32 [#allocation10], 4
      %s81 = int_to_ptr.vmem [resolvable:$true] %s80
      %86 = dma.hbm_to_vmem [thread:$0]  %s8, 512, %s81, [#allocation9], 128, 128, 8
    $region37: #{tpu_custom_call.1} parent=1 // pred_fallthru
      _
    // Predicated region
    $region38: #{tpu_custom_call.1} parent=1 // pred_check
      _
    $region39: #{tpu_custom_call.1} parent=1 // pred_check_branch
      %88 = sbr.rel (0) target = $region41
    $region40: #{tpu_custom_call.1} parent=1 // pred_region
      _
    $region41: #{tpu_custom_call.1} parent=1 // pred_fallthru
      _
    // Predicated region
    $region42: #{tpu_custom_call.1} parent=1 // pred_check
      _
    $region43: #{tpu_custom_call.1} parent=1 // pred_check_branch
      %90 = sbr.rel (0) target = $region45
    $region44: #{tpu_custom_call.1} parent=1 // pred_region
      %91 = dma.done [#allocation3], 256
    $region45: #{tpu_custom_call.1} parent=1 // pred_fallthru
      _
    // Predicated region
    $region46: #{tpu_custom_call.1} parent=1 // pred_check
      _
    $region47: #{tpu_custom_call.1} parent=1 // pred_check_branch
      %93 = sbr.rel (0) target = $region49
    $region48: #{tpu_custom_call.1} parent=1 // pred_region
      %94 = dma.done [#allocation6], 256
    $region49: #{tpu_custom_call.1} parent=1 // pred_fallthru
      _
    // Predicated region
    $region50: #{tpu_custom_call.1} parent=1 // pred_check
      _
    $region51: #{tpu_custom_call.1} parent=1 // pred_check_branch
      %96 = sbr.rel (0) target = $region53
    $region52: #{tpu_custom_call.1} parent=1 // pred_region
      %97 = dma.done [#allocation6], 512
    $region53: #{tpu_custom_call.1} parent=1 // pred_fallthru
      _
    // Predicated region
    $region54: #{tpu_custom_call.1} parent=1 // pred_check
      _
    $region55: #{tpu_custom_call.1} parent=1 // pred_check_branch
      %99 = sbr.rel (0) target = $region57
    $region56: #{tpu_custom_call.1} parent=1 // pred_region
      %100 = dma.done [#allocation9], 512
    $region57: #{tpu_custom_call.1} parent=1 // pred_fallthru
      _
    // Predicated region
    $region58: #{tpu_custom_call.1} parent=1 // pred_check
      _
    $region59: #{tpu_custom_call.1} parent=1 // pred_check_branch
      %102 = sbr.rel (0) target = $region61
    $region60: #{tpu_custom_call.1} parent=1 // pred_region
      %103 = dma.done [#allocation9], 512
    $region61: #{tpu_custom_call.1} parent=1 // pred_fallthru
      _
    %v104 = vld [vmem:[#allocation2] sm:$0xff]
    %v105 = vld [vmem:[#allocation2 + $0x8] sm:$0xff]
    %v106 = vld [vmem:[#allocation5] sm:$0xff]
    %v107 = vld [vmem:[#allocation5 + $0x8] sm:$0xff]
    %v108 = vld [vmem:[%s4] sm:$0xff]
    %v109 = vld [vmem:[%s4 + $0x8] sm:$0xff]
    %v110 = vld [vmem:[%s4 + $0x10] sm:$0xff]
    %v111 = vld [vmem:[%s4 + $0x18] sm:$0xff]
    %v112 = vld [vmem:[%s4 + $0x20] sm:$0xff]
    %v113 = vld [vmem:[%s4 + $0x28] sm:$0xff]
    %v114 = vld [vmem:[%s4 + $0x30] sm:$0xff]
    %v115 = vld [vmem:[%s4 + $0x38] sm:$0xff]
    %vm116 = vcmask 261120
    %v118 = vsel %vm116, %v104, 0
    %v121 = vsel %vm116, %v105, 0
    %123 = vmatprep.subr.mxu0 %v109
    %124 = vmatpush1.msra.mxu0 %v108
    %125 = vmatprep.subr.mxu0 %v111
    %126 = vmatpush1.msra.mxu0 %v110
    %127 = vmatprep.subr.mxu0 %v113
    %128 = vmatpush1.msra.mxu0 %v112
    %129 = vmatprep.subr.mxu0 %v115
    %130 = vmatpush1.msra.mxu0 %v114
    %131 = vmatprep.subr.mxu0 0.0
    %132 = vmatpush1.msra.mxu0 0.0
    %133 = vmatprep.subr.mxu0 0.0
    %134 = vmatpush1.msra.mxu0 0.0
    %135 = vmatprep.subr.mxu0 0.0
    %136 = vmatpush1.msra.mxu0 0.0
    %137 = vmatprep.subr.mxu0 0.0
    %138 = vmatpush1.msra.mxu0 0.0
    %139 = vmatprep.subr.mxu0 0.0
    %140 = vmatpush1.msra.mxu0 0.0
    %141 = vmatprep.subr.mxu0 0.0
    %142 = vmatpush1.msra.mxu0 0.0
    %143 = vmatprep.subr.mxu0 0.0
    %144 = vmatpush1.msra.mxu0 0.0
    %145 = vmatprep.subr.mxu0 0.0
    %146 = vmatpush1.msra.mxu0 0.0
    %147 = vmatprep.subr.mxu0 0.0
    %148 = vmatpush1.msra.mxu0 0.0
    %149 = vmatprep.subr.mxu0 0.0
    %150 = vmatpush1.msra.mxu0 0.0
    %151 = vmatprep.subr.mxu0 0.0
    %152 = vmatpush1.msra.mxu0 0.0
    %153 = vmatprep.subr.mxu0 0.0
    %154 = vmatpush1.msra.mxu0 0.0
    %155 = vmatprep.subr.mxu0 0.0
    %156 = vmatpush1.msra.mxu0 0.0
    %157 = vmatprep.subr.mxu0 0.0
    %158 = vmatpush1.msra.mxu0 0.0
    %159 = vmatprep.subr.mxu0 0.0
    %160 = vmatpush1.msra.mxu0 0.0
    %161 = vmatprep.subr.mxu0 0.0
    %162 = vmatpush1.msra.mxu0 0.0
    %163 = vmatprep.subr.mxu0 0.0
    %164 = vmatpush1.msra.mxu0 0.0
    %165 = vmatprep.subr.mxu0 0.0
    %166 = vmatpush1.msra.mxu0 0.0
    %167 = vmatprep.subr.mxu0 0.0
    %168 = vmatpush1.msra.mxu0 0.0
    %169 = vmatprep.subr.mxu0 0.0
    %170 = vmatpush1.msra.mxu0 0.0
    %171 = vmatprep.subr.mxu0 0.0
    %172 = vmatpush1.msra.mxu0 0.0
    %173 = vmatprep.subr.mxu0 0.0
    %174 = vmatpush1.msra.mxu0 0.0
    %175 = vmatprep.subr.mxu0 0.0
    %176 = vmatpush1.msra.mxu0 0.0
    %177 = vmatprep.subr.mxu0 0.0
    %178 = vmatpush1.msra.mxu0 0.0
    %179 = vmatprep.subr.mxu0 0.0
    %180 = vmatpush1.msra.mxu0 0.0
    %181 = vmatprep.subr.mxu0 0.0
    %182 = vmatpush1.msra.mxu0 0.0
    %183 = vmatprep.subr.mxu0 0.0
    %184 = vmatpush1.msra.mxu0 0.0
    %185 = vmatprep.subr.mxu0 0.0
    %186 = vmatpush1.msra.mxu0 0.0
    %187 = vmatprep.mubr.f32.mxu0 0.0
    %188 = vmatmul.mubr.f32.gmra.mrb[0].mxu0 %v118
    %v189 = vpop.f32.mrb[0].mxu0
    %v190 = vadd.f32 0.0, %v189
    %v191 = vpop.f32.mrb[0].mxu0
    %v192 = vadd.f32 0.0, %v191
    %193 = vmatprep.mubr.f32.mxu0 0.0
    %194 = vmatmul.mubr.f32.gmra.mrb[0].mxu0 %v121
    %v195 = vpop.f32.mrb[0].mxu0
    %v196 = vadd.f32 0.0, %v195
    %v197 = vpop.f32.mrb[0].mxu0
    %v198 = vadd.f32 0.0, %v197
    %199 = vdwg.mxu0
    %v200 = vld [vmem:[%s2] sm:$0xff]
    %v201 = vld [vmem:[%s2 + $0x8] sm:$0xff]
    %v202 = vld [vmem:[%s2 + $0x10] sm:$0xff]
    %v203 = vld [vmem:[%s2 + $0x18] sm:$0xff]
    %v204 = vmul.f32 %v190, %v200
    %v205 = vmul.f32 %v192, %v201
    %v206 = vmul.f32 %v196, %v202
    %v207 = vmul.f32 %v198, %v203
    %210 = vrot.lane.b32.xlu0 %v204, 32
    %v211 = vpop.permute.xlu0 %210
    %212 = vrot.lane.b32.xlu0 %v206, 32
    %v213 = vpop.permute.xlu0 %212
    %v216 = vadd.f32 %v204, %v211
    %v217 = vadd.f32 %v206, %v213
    %220 = vrot.lane.b32.xlu0 %v205, 32
    %v221 = vpop.permute.xlu0 %220
    %222 = vrot.lane.b32.xlu0 %v207, 32
    %v223 = vpop.permute.xlu0 %222
    %v226 = vadd.f32 %v204, %v221
    %v227 = vadd.f32 %v206, %v223
    %v228 = vld [vmem:[%s3] sm:$0x1]
    %v230 = vlaneseq
    %v231 = vshrl.u32 %v230, 7
    %v232 = vsub.s32 0, %v231
    %v233 = vrot.slane %v228, %v232
    %234 = vrot.lane.b32.xlu0 %v233, 32
    %v235 = vpop.permute.xlu0 %234
    %v237 = vmul.f32 %v226, %v235
    %v238 = vmul.f32 %v227, %v235
    %241 = vrot.lane.b32.xlu0 %v237, 96
    %v242 = vpop.permute.xlu0 %241
    %243 = vrot.lane.b32.xlu0 %v238, 96
    %v244 = vpop.permute.xlu0 %243
    %v246 = vsel %vm116, %v216, 0
    %v249 = vsel %vm116, %v217, 0
    %v251 = vsel %vm116, %v242, 0
    %v253 = vsel %vm116, %v244, 0
    %255 = vmatprep.subr.mxu0 0.0
    %256 = vmatpush1.xpose.msra.mxu0 %v251
    %257 = vmatprep.subr.mxu0 0.0
    %258 = vmatpush1.xpose.msra.mxu0 %v253
    %259 = vmatprep.subr.mxu0 0.0
    %260 = vmatpush1.xpose.msra.mxu0 0.0
    %261 = vmatprep.subr.mxu0 0.0
    %262 = vmatpush1.xpose.msra.mxu0 0.0
    %263 = vmatprep.subr.mxu0 0.0
    %264 = vmatpush1.xpose.msra.mxu0 0.0
    %265 = vmatprep.subr.mxu0 0.0
    %266 = vmatpush1.xpose.msra.mxu0 0.0
    %267 = vmatprep.subr.mxu0 0.0
    %268 = vmatpush1.xpose.msra.mxu0 0.0
    %269 = vmatprep.subr.mxu0 0.0
    %270 = vmatpush1.xpose.msra.mxu0 0.0
    %271 = vmatprep.subr.mxu0 0.0
    %272 = vmatpush1.xpose.msra.mxu0 0.0
    %273 = vmatprep.subr.mxu0 0.0
    %274 = vmatpush1.xpose.msra.mxu0 0.0
    %275 = vmatprep.subr.mxu0 0.0
    %276 = vmatpush1.xpose.msra.mxu0 0.0
    %277 = vmatprep.subr.mxu0 0.0
    %278 = vmatpush1.xpose.msra.mxu0 0.0
    %279 = vmatprep.subr.mxu0 0.0
    %280 = vmatpush1.xpose.msra.mxu0 0.0
    %281 = vmatprep.subr.mxu0 0.0
    %282 = vmatpush1.xpose.msra.mxu0 0.0
    %283 = vmatprep.subr.mxu0 0.0
    %284 = vmatpush1.xpose.msra.mxu0 0.0
    %285 = vmatprep.subr.mxu0 0.0
    %286 = vmatpush1.xpose.msra.mxu0 0.0
    %287 = vmatprep.subr.mxu0 0.0
    %288 = vmatpush1.xpose.msra.mxu0 0.0
    %289 = vmatprep.subr.mxu0 0.0
    %290 = vmatpush1.xpose.msra.mxu0 0.0
    %291 = vmatprep.subr.mxu0 0.0
    %292 = vmatpush1.xpose.msra.mxu0 0.0
    %293 = vmatprep.subr.mxu0 0.0
    %294 = vmatpush1.xpose.msra.mxu0 0.0
    %295 = vmatprep.subr.mxu0 0.0
    %296 = vmatpush1.xpose.msra.mxu0 0.0
    %297 = vmatprep.subr.mxu0 0.0
    %298 = vmatpush1.xpose.msra.mxu0 0.0
    %299 = vmatprep.subr.mxu0 0.0
    %300 = vmatpush1.xpose.msra.mxu0 0.0
    %301 = vmatprep.subr.mxu0 0.0
    %302 = vmatpush1.xpose.msra.mxu0 0.0
    %303 = vmatprep.subr.mxu0 0.0
    %304 = vmatpush1.xpose.msra.mxu0 0.0
    %305 = vmatprep.subr.mxu0 0.0
    %306 = vmatpush1.xpose.msra.mxu0 0.0
    %307 = vmatprep.subr.mxu0 0.0
    %308 = vmatpush1.xpose.msra.mxu0 0.0
    %309 = vmatprep.subr.mxu0 0.0
    %310 = vmatpush1.xpose.msra.mxu0 0.0
    %311 = vmatprep.subr.mxu0 0.0
    %312 = vmatpush1.xpose.msra.mxu0 0.0
    %313 = vmatprep.subr.mxu0 0.0
    %314 = vmatpush1.xpose.msra.mxu0 0.0
    %315 = vmatprep.subr.mxu0 0.0
    %316 = vmatpush1.xpose.msra.mxu0 0.0
    %317 = vmatprep.subr.mxu0 0.0
    %318 = vmatpush1.xpose.msra.mxu0 0.0
    %319 = vmatprep.mubr.f32.mxu0 0.0
    %320 = vmatmul.mubr.f32.gmra.mrb[0].mxu0 %v246
    %v321 = vpop.f32.mrb[0].mxu0
    %v322 = vadd.f32 %v106, %v321
    %v323 = vpop.f32.mrb[0].mxu0
    %324 = vmatprep.mubr.f32.mxu0 0.0
    %325 = vmatmul.mubr.f32.gmra.mrb[0].mxu0 %v249
    %v326 = vpop.f32.mrb[0].mxu0
    %v327 = vadd.f32 %v107, %v326
    %v328 = vpop.f32.mrb[0].mxu0
    %329 = vdwg.mxu0
    %vm330 = vcmask 130048
    %v331 = vsel %vm330, %v322, -inf
    %332 = vmax.xlane.f32.xlu0 %v331
    %v333 = vpop.xlane.xlu0 %332
    %v334 = vsel %vm330, %v327, -inf
    %335 = vmax.xlane.f32.xlu0 %v334
    %v336 = vpop.xlane.xlu0 %335
    %v337 = vsub.f32 %v322, %v333
    %v338 = vsub.f32 %v327, %v336
    %v339 = vmul.f32 %v337, 1.442695
    %v340 = vpow.pop %v339
    %v341 = vmul.f32 %v338, 1.442695
    %v342 = vpow.pop %v341
    %v343 = vsel %vm330, %v340, 0.0
    %344 = vadd.xlane.f32.xlu0 %v343
    %v345 = vpop.xlane.xlu0 %344
    %v346 = vsel %vm330, %v342, 0.0
    %347 = vadd.xlane.f32.xlu0 %v346
    %v348 = vpop.xlane.xlu0 %347
    %v349 = vrcp.pop %v345
    %v350 = vrcp.pop %v348
    %v351 = vmul.f32 %v340, %v349
    %v352 = vmul.f32 %v342, %v350
    %353 = vrot.lane.b32.xlu0 %v233, 64
    %v354 = vpop.permute.xlu0 %353
    %v356 = vmul.f32 %v204, %v354
    %v357 = vmul.f32 %v206, %v354
    %s358 = scalar_lea.vmem %s3, 1
    %v359 = vld [vmem:[%s358] sm:$0x1]
    %v361 = vlaneseq
    %v362 = vshrl.u32 %v361, 7
    %v363 = vsub.s32 0, %v362
    %v364 = vrot.slane %v359, %v363
    %365 = vrot.lane.b32.xlu0 %v364, 32
    %v366 = vpop.permute.xlu0 %365
    %v368 = vmul.f32 %v226, %v366
    %v369 = vmul.f32 %v227, %v366
    %372 = vrot.lane.b32.xlu0 %v368, 96
    %v373 = vpop.permute.xlu0 %372
    %374 = vrot.lane.b32.xlu0 %v369, 96
    %v375 = vpop.permute.xlu0 %374
    %v376 = vsel %vm116, %v373, 0
    %v378 = vsel %vm116, %v375, 0
    %380 = vmatprep.subr.mxu0 0.0
    %381 = vmatpush1.xpose.msra.mxu0 %v376
    %382 = vmatprep.subr.mxu0 0.0
    %383 = vmatpush1.xpose.msra.mxu0 %v378
    %384 = vmatprep.subr.mxu0 0.0
    %385 = vmatpush1.xpose.msra.mxu0 0.0
    %386 = vmatprep.subr.mxu0 0.0
    %387 = vmatpush1.xpose.msra.mxu0 0.0
    %388 = vmatprep.subr.mxu0 0.0
    %389 = vmatpush1.xpose.msra.mxu0 0.0
    %390 = vmatprep.subr.mxu0 0.0
    %391 = vmatpush1.xpose.msra.mxu0 0.0
    %392 = vmatprep.subr.mxu0 0.0
    %393 = vmatpush1.xpose.msra.mxu0 0.0
    %394 = vmatprep.subr.mxu0 0.0
    %395 = vmatpush1.xpose.msra.mxu0 0.0
    %396 = vmatprep.subr.mxu0 0.0
    %397 = vmatpush1.xpose.msra.mxu0 0.0
    %398 = vmatprep.subr.mxu0 0.0
    %399 = vmatpush1.xpose.msra.mxu0 0.0
    %400 = vmatprep.subr.mxu0 0.0
    %401 = vmatpush1.xpose.msra.mxu0 0.0
    %402 = vmatprep.subr.mxu0 0.0
    %403 = vmatpush1.xpose.msra.mxu0 0.0
    %404 = vmatprep.subr.mxu0 0.0
    %405 = vmatpush1.xpose.msra.mxu0 0.0
    %406 = vmatprep.subr.mxu0 0.0
    %407 = vmatpush1.xpose.msra.mxu0 0.0
    %408 = vmatprep.subr.mxu0 0.0
    %409 = vmatpush1.xpose.msra.mxu0 0.0
    %410 = vmatprep.subr.mxu0 0.0
    %411 = vmatpush1.xpose.msra.mxu0 0.0
    %412 = vmatprep.subr.mxu0 0.0
    %413 = vmatpush1.xpose.msra.mxu0 0.0
    %414 = vmatprep.subr.mxu0 0.0
    %415 = vmatpush1.xpose.msra.mxu0 0.0
    %416 = vmatprep.subr.mxu0 0.0
    %417 = vmatpush1.xpose.msra.mxu0 0.0
    %418 = vmatprep.subr.mxu0 0.0
    %419 = vmatpush1.xpose.msra.mxu0 0.0
    %420 = vmatprep.subr.mxu0 0.0
    %421 = vmatpush1.xpose.msra.mxu0 0.0
    %422 = vmatprep.subr.mxu0 0.0
    %423 = vmatpush1.xpose.msra.mxu0 0.0
    %424 = vmatprep.subr.mxu0 0.0
    %425 = vmatpush1.xpose.msra.mxu0 0.0
    %426 = vmatprep.subr.mxu0 0.0
    %427 = vmatpush1.xpose.msra.mxu0 0.0
    %428 = vmatprep.subr.mxu0 0.0
    %429 = vmatpush1.xpose.msra.mxu0 0.0
    %430 = vmatprep.subr.mxu0 0.0
    %431 = vmatpush1.xpose.msra.mxu0 0.0
    %432 = vmatprep.subr.mxu0 0.0
    %433 = vmatpush1.xpose.msra.mxu0 0.0
    %434 = vmatprep.subr.mxu0 0.0
    %435 = vmatpush1.xpose.msra.mxu0 0.0
    %436 = vmatprep.subr.mxu0 0.0
    %437 = vmatpush1.xpose.msra.mxu0 0.0
    %438 = vmatprep.subr.mxu0 0.0
    %439 = vmatpush1.xpose.msra.mxu0 0.0
    %440 = vmatprep.subr.mxu0 0.0
    %441 = vmatpush1.xpose.msra.mxu0 0.0
    %442 = vmatprep.subr.mxu0 0.0
    %443 = vmatpush1.xpose.msra.mxu0 0.0
    %444 = vmatprep.mubr.f32.mxu0 0.0
    %445 = vmatmul.mubr.f32.gmra.mrb[0].mxu0 %v246
    %v446 = vpop.f32.mrb[0].mxu0
    %v447 = vadd.f32 %v106, %v446
    %v448 = vpop.f32.mrb[0].mxu0
    %449 = vmatprep.mubr.f32.mxu0 0.0
    %450 = vmatmul.mubr.f32.gmra.mrb[0].mxu0 %v249
    %v451 = vpop.f32.mrb[0].mxu0
    %v452 = vadd.f32 %v107, %v451
    %v453 = vpop.f32.mrb[0].mxu0
    %454 = vdwg.mxu0
    %v455 = vsel %vm330, %v447, -inf
    %456 = vmax.xlane.f32.xlu0 %v455
    %v457 = vpop.xlane.xlu0 %456
    %v458 = vsel %vm330, %v452, -inf
    %459 = vmax.xlane.f32.xlu0 %v458
    %v460 = vpop.xlane.xlu0 %459
    %v461 = vsub.f32 %v447, %v457
    %v462 = vsub.f32 %v452, %v460
    %v463 = vmul.f32 %v461, 1.442695
    %v464 = vpow.pop %v463
    %v465 = vmul.f32 %v462, 1.442695
    %v466 = vpow.pop %v465
    %v467 = vsel %vm330, %v464, 0.0
    %468 = vadd.xlane.f32.xlu0 %v467
    %v469 = vpop.xlane.xlu0 %468
    %v470 = vsel %vm330, %v466, 0.0
    %471 = vadd.xlane.f32.xlu0 %v470
    %v472 = vpop.xlane.xlu0 %471
    %v473 = vrcp.pop %v469
    %v474 = vrcp.pop %v472
    %v475 = vmul.f32 %v464, %v473
    %v476 = vmul.f32 %v466, %v474
    %477 = vrot.lane.b32.xlu0 %v364, 64
    %v478 = vpop.permute.xlu0 %477
    %v480 = vmul.f32 %v204, %v478
    %v481 = vmul.f32 %v206, %v478
    %484 = vrot.lane.b32.xlu0 %v480, 64
    %v485 = vpop.permute.xlu0 %484
    %486 = vrot.lane.b32.xlu0 %v481, 64
    %v487 = vpop.permute.xlu0 %486
    %v491 = vsel %vm330, %v475, 0
    %v494 = vsel %vm330, %v476, 0
    %496 = vmatprep.subr.mxu0 0.0
    %497 = vmatpush1.msra.mxu0 %v485
    %498 = vmatprep.subr.mxu0 0.0
    %499 = vmatpush1.msra.mxu0 %v487
    %500 = vmatprep.subr.mxu0 0.0
    %501 = vmatpush1.msra.mxu0 0.0
    %502 = vmatprep.subr.mxu0 0.0
    %503 = vmatpush1.msra.mxu0 0.0
    %504 = vmatprep.subr.mxu0 0.0
    %505 = vmatpush1.msra.mxu0 0.0
    %506 = vmatprep.subr.mxu0 0.0
    %507 = vmatpush1.msra.mxu0 0.0
    %508 = vmatprep.subr.mxu0 0.0
    %509 = vmatpush1.msra.mxu0 0.0
    %510 = vmatprep.subr.mxu0 0.0
    %511 = vmatpush1.msra.mxu0 0.0
    %512 = vmatprep.subr.mxu0 0.0
    %513 = vmatpush1.msra.mxu0 0.0
    %514 = vmatprep.subr.mxu0 0.0
    %515 = vmatpush1.msra.mxu0 0.0
    %516 = vmatprep.subr.mxu0 0.0
    %517 = vmatpush1.msra.mxu0 0.0
    %518 = vmatprep.subr.mxu0 0.0
    %519 = vmatpush1.msra.mxu0 0.0
    %520 = vmatprep.subr.mxu0 0.0
    %521 = vmatpush1.msra.mxu0 0.0
    %522 = vmatprep.subr.mxu0 0.0
    %523 = vmatpush1.msra.mxu0 0.0
    %524 = vmatprep.subr.mxu0 0.0
    %525 = vmatpush1.msra.mxu0 0.0
    %526 = vmatprep.subr.mxu0 0.0
    %527 = vmatpush1.msra.mxu0 0.0
    %528 = vmatprep.subr.mxu0 0.0
    %529 = vmatpush1.msra.mxu0 0.0
    %530 = vmatprep.subr.mxu0 0.0
    %531 = vmatpush1.msra.mxu0 0.0
    %532 = vmatprep.subr.mxu0 0.0
    %533 = vmatpush1.msra.mxu0 0.0
    %534 = vmatprep.subr.mxu0 0.0
    %535 = vmatpush1.msra.mxu0 0.0
    %536 = vmatprep.subr.mxu0 0.0
    %537 = vmatpush1.msra.mxu0 0.0
    %538 = vmatprep.subr.mxu0 0.0
    %539 = vmatpush1.msra.mxu0 0.0
    %540 = vmatprep.subr.mxu0 0.0
    %541 = vmatpush1.msra.mxu0 0.0
    %542 = vmatprep.subr.mxu0 0.0
    %543 = vmatpush1.msra.mxu0 0.0
    %544 = vmatprep.subr.mxu0 0.0
    %545 = vmatpush1.msra.mxu0 0.0
    %546 = vmatprep.subr.mxu0 0.0
    %547 = vmatpush1.msra.mxu0 0.0
    %548 = vmatprep.subr.mxu0 0.0
    %549 = vmatpush1.msra.mxu0 0.0
    %550 = vmatprep.subr.mxu0 0.0
    %551 = vmatpush1.msra.mxu0 0.0
    %552 = vmatprep.subr.mxu0 0.0
    %553 = vmatpush1.msra.mxu0 0.0
    %554 = vmatprep.subr.mxu0 0.0
    %555 = vmatpush1.msra.mxu0 0.0
    %556 = vmatprep.subr.mxu0 0.0
    %557 = vmatpush1.msra.mxu0 0.0
    %558 = vmatprep.subr.mxu0 0.0
    %559 = vmatpush1.msra.mxu0 0.0
    %560 = vmatprep.mubr.f32.mxu0 0.0
    %561 = vmatmul.mubr.f32.gmra.mrb[0].mxu0 %v491
    %v562 = vpop.f32.mrb[0].mxu0
    %v563 = vadd.f32 0.0, %v562
    %v564 = vpop.f32.mrb[0].mxu0
    %565 = vmatprep.mubr.f32.mxu0 0.0
    %566 = vmatmul.mubr.f32.gmra.mrb[0].mxu0 %v494
    %v567 = vpop.f32.mrb[0].mxu0
    %v568 = vadd.f32 0.0, %v567
    %v569 = vpop.f32.mrb[0].mxu0
    %570 = vdwg.mxu0
    %573 = vrot.lane.b32.xlu0 %v356, 64
    %v574 = vpop.permute.xlu0 %573
    %575 = vrot.lane.b32.xlu0 %v357, 64
    %v576 = vpop.permute.xlu0 %575
    %v580 = vsel %vm330, %v351, 0
    %v583 = vsel %vm330, %v352, 0
    %585 = vmatprep.subr.mxu0 0.0
    %586 = vmatpush1.msra.mxu0 %v574
    %587 = vmatprep.subr.mxu0 0.0
    %588 = vmatpush1.msra.mxu0 %v576
    %589 = vmatprep.subr.mxu0 0.0
    %590 = vmatpush1.msra.mxu0 0.0
    %591 = vmatprep.subr.mxu0 0.0
    %592 = vmatpush1.msra.mxu0 0.0
    %593 = vmatprep.subr.mxu0 0.0
    %594 = vmatpush1.msra.mxu0 0.0
    %595 = vmatprep.subr.mxu0 0.0
    %596 = vmatpush1.msra.mxu0 0.0
    %597 = vmatprep.subr.mxu0 0.0
    %598 = vmatpush1.msra.mxu0 0.0
    %599 = vmatprep.subr.mxu0 0.0
    %600 = vmatpush1.msra.mxu0 0.0
    %601 = vmatprep.subr.mxu0 0.0
    %602 = vmatpush1.msra.mxu0 0.0
    %603 = vmatprep.subr.mxu0 0.0
    %604 = vmatpush1.msra.mxu0 0.0
    %605 = vmatprep.subr.mxu0 0.0
    %606 = vmatpush1.msra.mxu0 0.0
    %607 = vmatprep.subr.mxu0 0.0
    %608 = vmatpush1.msra.mxu0 0.0
    %609 = vmatprep.subr.mxu0 0.0
    %610 = vmatpush1.msra.mxu0 0.0
    %611 = vmatprep.subr.mxu0 0.0
    %612 = vmatpush1.msra.mxu0 0.0
    %613 = vmatprep.subr.mxu0 0.0
    %614 = vmatpush1.msra.mxu0 0.0
    %615 = vmatprep.subr.mxu0 0.0
    %616 = vmatpush1.msra.mxu0 0.0
    %617 = vmatprep.subr.mxu0 0.0
    %618 = vmatpush1.msra.mxu0 0.0
    %619 = vmatprep.subr.mxu0 0.0
    %620 = vmatpush1.msra.mxu0 0.0
    %621 = vmatprep.subr.mxu0 0.0
    %622 = vmatpush1.msra.mxu0 0.0
    %623 = vmatprep.subr.mxu0 0.0
    %624 = vmatpush1.msra.mxu0 0.0
    %625 = vmatprep.subr.mxu0 0.0
    %626 = vmatpush1.msra.mxu0 0.0
    %627 = vmatprep.subr.mxu0 0.0
    %628 = vmatpush1.msra.mxu0 0.0
    %629 = vmatprep.subr.mxu0 0.0
    %630 = vmatpush1.msra.mxu0 0.0
    %631 = vmatprep.subr.mxu0 0.0
    %632 = vmatpush1.msra.mxu0 0.0
    %633 = vmatprep.subr.mxu0 0.0
    %634 = vmatpush1.msra.mxu0 0.0
    %635 = vmatprep.subr.mxu0 0.0
    %636 = vmatpush1.msra.mxu0 0.0
    %637 = vmatprep.subr.mxu0 0.0
    %638 = vmatpush1.msra.mxu0 0.0
    %639 = vmatprep.subr.mxu0 0.0
    %640 = vmatpush1.msra.mxu0 0.0
    %641 = vmatprep.subr.mxu0 0.0
    %642 = vmatpush1.msra.mxu0 0.0
    %643 = vmatprep.subr.mxu0 0.0
    %644 = vmatpush1.msra.mxu0 0.0
    %645 = vmatprep.subr.mxu0 0.0
    %646 = vmatpush1.msra.mxu0 0.0
    %647 = vmatprep.subr.mxu0 0.0
    %648 = vmatpush1.msra.mxu0 0.0
    %649 = vmatprep.mubr.f32.mxu0 0.0
    %650 = vmatmul.mubr.f32.gmra.mrb[0].mxu0 %v580
    %v651 = vpop.f32.mrb[0].mxu0
    %v652 = vadd.f32 %v563, %v651
    %v653 = vpop.f32.mrb[0].mxu0
    %654 = vmatprep.mubr.f32.mxu0 0.0
    %655 = vmatmul.mubr.f32.gmra.mrb[0].mxu0 %v583
    %v656 = vpop.f32.mrb[0].mxu0
    %v657 = vadd.f32 %v568, %v656
    %v658 = vpop.f32.mrb[0].mxu0
    %659 = vdwg.mxu0
    %s660 = scalar_lea.vmem %s3, 2
    %v661 = vld [vmem:[%s660] sm:$0x1]
    %v663 = vlaneseq
    %v664 = vshrl.u32 %v663, 7
    %v665 = vsub.s32 0, %v664
    %v666 = vrot.slane %v661, %v665
    %667 = vrot.lane.b32.xlu0 %v666, 32
    %v668 = vpop.permute.xlu0 %667
    %v670 = vmul.f32 %v226, %v668
    %v671 = vmul.f32 %v227, %v668
    %674 = vrot.lane.b32.xlu0 %v670, 96
    %v675 = vpop.permute.xlu0 %674
    %676 = vrot.lane.b32.xlu0 %v671, 96
    %v677 = vpop.permute.xlu0 %676
    %v678 = vsel %vm116, %v675, 0
    %v680 = vsel %vm116, %v677, 0
    %682 = vmatprep.subr.mxu0 0.0
    %683 = vmatpush1.xpose.msra.mxu0 %v678
    %684 = vmatprep.subr.mxu0 0.0
    %685 = vmatpush1.xpose.msra.mxu0 %v680
    %686 = vmatprep.subr.mxu0 0.0
    %687 = vmatpush1.xpose.msra.mxu0 0.0
    %688 = vmatprep.subr.mxu0 0.0
    %689 = vmatpush1.xpose.msra.mxu0 0.0
    %690 = vmatprep.subr.mxu0 0.0
    %691 = vmatpush1.xpose.msra.mxu0 0.0
    %692 = vmatprep.subr.mxu0 0.0
    %693 = vmatpush1.xpose.msra.mxu0 0.0
    %694 = vmatprep.subr.mxu0 0.0
    %695 = vmatpush1.xpose.msra.mxu0 0.0
    %696 = vmatprep.subr.mxu0 0.0
    %697 = vmatpush1.xpose.msra.mxu0 0.0
    %698 = vmatprep.subr.mxu0 0.0
    %699 = vmatpush1.xpose.msra.mxu0 0.0
    %700 = vmatprep.subr.mxu0 0.0
    %701 = vmatpush1.xpose.msra.mxu0 0.0
    %702 = vmatprep.subr.mxu0 0.0
    %703 = vmatpush1.xpose.msra.mxu0 0.0
    %704 = vmatprep.subr.mxu0 0.0
    %705 = vmatpush1.xpose.msra.mxu0 0.0
    %706 = vmatprep.subr.mxu0 0.0
    %707 = vmatpush1.xpose.msra.mxu0 0.0
    %708 = vmatprep.subr.mxu0 0.0
    %709 = vmatpush1.xpose.msra.mxu0 0.0
    %710 = vmatprep.subr.mxu0 0.0
    %711 = vmatpush1.xpose.msra.mxu0 0.0
    %712 = vmatprep.subr.mxu0 0.0
    %713 = vmatpush1.xpose.msra.mxu0 0.0
    %714 = vmatprep.subr.mxu0 0.0
    %715 = vmatpush1.xpose.msra.mxu0 0.0
    %716 = vmatprep.subr.mxu0 0.0
    %717 = vmatpush1.xpose.msra.mxu0 0.0
    %718 = vmatprep.subr.mxu0 0.0
    %719 = vmatpush1.xpose.msra.mxu0 0.0
    %720 = vmatprep.subr.mxu0 0.0
    %721 = vmatpush1.xpose.msra.mxu0 0.0
    %722 = vmatprep.subr.mxu0 0.0
    %723 = vmatpush1.xpose.msra.mxu0 0.0
    %724 = vmatprep.subr.mxu0 0.0
    %725 = vmatpush1.xpose.msra.mxu0 0.0
    %726 = vmatprep.subr.mxu0 0.0
    %727 = vmatpush1.xpose.msra.mxu0 0.0
    %728 = vmatprep.subr.mxu0 0.0
    %729 = vmatpush1.xpose.msra.mxu0 0.0
    %730 = vmatprep.subr.mxu0 0.0
    %731 = vmatpush1.xpose.msra.mxu0 0.0
    %732 = vmatprep.subr.mxu0 0.0
    %733 = vmatpush1.xpose.msra.mxu0 0.0
    %734 = vmatprep.subr.mxu0 0.0
    %735 = vmatpush1.xpose.msra.mxu0 0.0
    %736 = vmatprep.subr.mxu0 0.0
    %737 = vmatpush1.xpose.msra.mxu0 0.0
    %738 = vmatprep.subr.mxu0 0.0
    %739 = vmatpush1.xpose.msra.mxu0 0.0
    %740 = vmatprep.subr.mxu0 0.0
    %741 = vmatpush1.xpose.msra.mxu0 0.0
    %742 = vmatprep.subr.mxu0 0.0
    %743 = vmatpush1.xpose.msra.mxu0 0.0
    %744 = vmatprep.subr.mxu0 0.0
    %745 = vmatpush1.xpose.msra.mxu0 0.0
    %746 = vmatprep.mubr.f32.mxu0 0.0
    %747 = vmatmul.mubr.f32.gmra.mrb[0].mxu0 %v246
    %v748 = vpop.f32.mrb[0].mxu0
    %v749 = vadd.f32 %v106, %v748
    %v750 = vpop.f32.mrb[0].mxu0
    %751 = vmatprep.mubr.f32.mxu0 0.0
    %752 = vmatmul.mubr.f32.gmra.mrb[0].mxu0 %v249
    %v753 = vpop.f32.mrb[0].mxu0
    %v754 = vadd.f32 %v107, %v753
    %v755 = vpop.f32.mrb[0].mxu0
    %756 = vdwg.mxu0
    %v757 = vsel %vm330, %v749, -inf
    %758 = vmax.xlane.f32.xlu0 %v757
    %v759 = vpop.xlane.xlu0 %758
    %v760 = vsel %vm330, %v754, -inf
    %761 = vmax.xlane.f32.xlu0 %v760
    %v762 = vpop.xlane.xlu0 %761
    %v763 = vsub.f32 %v749, %v759
    %v764 = vsub.f32 %v754, %v762
    %v765 = vmul.f32 %v763, 1.442695
    %v766 = vpow.pop %v765
    %v767 = vmul.f32 %v764, 1.442695
    %v768 = vpow.pop %v767
    %v769 = vsel %vm330, %v766, 0.0
    %770 = vadd.xlane.f32.xlu0 %v769
    %v771 = vpop.xlane.xlu0 %770
    %v772 = vsel %vm330, %v768, 0.0
    %773 = vadd.xlane.f32.xlu0 %v772
    %v774 = vpop.xlane.xlu0 %773
    %v775 = vrcp.pop %v771
    %v776 = vrcp.pop %v774
    %v777 = vmul.f32 %v766, %v775
    %v778 = vmul.f32 %v768, %v776
    %779 = vrot.lane.b32.xlu0 %v666, 64
    %v780 = vpop.permute.xlu0 %779
    %v782 = vmul.f32 %v204, %v780
    %v783 = vmul.f32 %v206, %v780
    %786 = vrot.lane.b32.xlu0 %v782, 64
    %v787 = vpop.permute.xlu0 %786
    %788 = vrot.lane.b32.xlu0 %v783, 64
    %v789 = vpop.permute.xlu0 %788
    %v793 = vsel %vm330, %v777, 0
    %v796 = vsel %vm330, %v778, 0
    %798 = vmatprep.subr.mxu0 0.0
    %799 = vmatpush1.msra.mxu0 %v787
    %800 = vmatprep.subr.mxu0 0.0
    %801 = vmatpush1.msra.mxu0 %v789
    %802 = vmatprep.subr.mxu0 0.0
    %803 = vmatpush1.msra.mxu0 0.0
    %804 = vmatprep.subr.mxu0 0.0
    %805 = vmatpush1.msra.mxu0 0.0
    %806 = vmatprep.subr.mxu0 0.0
    %807 = vmatpush1.msra.mxu0 0.0
    %808 = vmatprep.subr.mxu0 0.0
    %809 = vmatpush1.msra.mxu0 0.0
    %810 = vmatprep.subr.mxu0 0.0
    %811 = vmatpush1.msra.mxu0 0.0
    %812 = vmatprep.subr.mxu0 0.0
    %813 = vmatpush1.msra.mxu0 0.0
    %814 = vmatprep.subr.mxu0 0.0
    %815 = vmatpush1.msra.mxu0 0.0
    %816 = vmatprep.subr.mxu0 0.0
    %817 = vmatpush1.msra.mxu0 0.0
    %818 = vmatprep.subr.mxu0 0.0
    %819 = vmatpush1.msra.mxu0 0.0
    %820 = vmatprep.subr.mxu0 0.0
    %821 = vmatpush1.msra.mxu0 0.0
    %822 = vmatprep.subr.mxu0 0.0
    %823 = vmatpush1.msra.mxu0 0.0
    %824 = vmatprep.subr.mxu0 0.0
    %825 = vmatpush1.msra.mxu0 0.0
    %826 = vmatprep.subr.mxu0 0.0
    %827 = vmatpush1.msra.mxu0 0.0
    %828 = vmatprep.subr.mxu0 0.0
    %829 = vmatpush1.msra.mxu0 0.0
    %830 = vmatprep.subr.mxu0 0.0
    %831 = vmatpush1.msra.mxu0 0.0
    %832 = vmatprep.subr.mxu0 0.0
    %833 = vmatpush1.msra.mxu0 0.0
    %834 = vmatprep.subr.mxu0 0.0
    %835 = vmatpush1.msra.mxu0 0.0
    %836 = vmatprep.subr.mxu0 0.0
    %837 = vmatpush1.msra.mxu0 0.0
    %838 = vmatprep.subr.mxu0 0.0
    %839 = vmatpush1.msra.mxu0 0.0
    %840 = vmatprep.subr.mxu0 0.0
    %841 = vmatpush1.msra.mxu0 0.0
    %842 = vmatprep.subr.mxu0 0.0
    %843 = vmatpush1.msra.mxu0 0.0
    %844 = vmatprep.subr.mxu0 0.0
    %845 = vmatpush1.msra.mxu0 0.0
    %846 = vmatprep.subr.mxu0 0.0
    %847 = vmatpush1.msra.mxu0 0.0
    %848 = vmatprep.subr.mxu0 0.0
    %849 = vmatpush1.msra.mxu0 0.0
    %850 = vmatprep.subr.mxu0 0.0
    %851 = vmatpush1.msra.mxu0 0.0
    %852 = vmatprep.subr.mxu0 0.0
    %853 = vmatpush1.msra.mxu0 0.0
    %854 = vmatprep.subr.mxu0 0.0
    %855 = vmatpush1.msra.mxu0 0.0
    %856 = vmatprep.subr.mxu0 0.0
    %857 = vmatpush1.msra.mxu0 0.0
    %858 = vmatprep.subr.mxu0 0.0
    %859 = vmatpush1.msra.mxu0 0.0
    %860 = vmatprep.subr.mxu0 0.0
    %861 = vmatpush1.msra.mxu0 0.0
    %862 = vmatprep.mubr.f32.mxu0 0.0
    %863 = vmatmul.mubr.f32.gmra.mrb[0].mxu0 %v793
    %v864 = vpop.f32.mrb[0].mxu0
    %v865 = vadd.f32 0.0, %v864
    %v866 = vpop.f32.mrb[0].mxu0
    %867 = vmatprep.mubr.f32.mxu0 0.0
    %868 = vmatmul.mubr.f32.gmra.mrb[0].mxu0 %v796
    %v869 = vpop.f32.mrb[0].mxu0
    %v870 = vadd.f32 0.0, %v869
    %v871 = vpop.f32.mrb[0].mxu0
    %872 = vdwg.mxu0
    %v873 = vadd.f32 %v652, %v865
    %v874 = vadd.f32 %v657, %v870
    %s875 = scalar_lea.vmem %s3, 3
    %v876 = vld [vmem:[%s875] sm:$0x1]
    %v878 = vlaneseq
    %v879 = vshrl.u32 %v878, 7
    %v880 = vsub.s32 0, %v879
    %v881 = vrot.slane %v876, %v880
    %882 = vrot.lane.b32.xlu0 %v881, 32
    %v883 = vpop.permute.xlu0 %882
    %v885 = vmul.f32 %v226, %v883
    %v886 = vmul.f32 %v227, %v883
    %889 = vrot.lane.b32.xlu0 %v885, 96
    %v890 = vpop.permute.xlu0 %889
    %891 = vrot.lane.b32.xlu0 %v886, 96
    %v892 = vpop.permute.xlu0 %891
    %v893 = vsel %vm116, %v890, 0
    %v895 = vsel %vm116, %v892, 0
    %897 = vmatprep.subr.mxu0 0.0
    %898 = vmatpush1.xpose.msra.mxu0 %v893
    %899 = vmatprep.subr.mxu0 0.0
    %900 = vmatpush1.xpose.msra.mxu0 %v895
    %901 = vmatprep.subr.mxu0 0.0
    %902 = vmatpush1.xpose.msra.mxu0 0.0
    %903 = vmatprep.subr.mxu0 0.0
    %904 = vmatpush1.xpose.msra.mxu0 0.0
    %905 = vmatprep.subr.mxu0 0.0
    %906 = vmatpush1.xpose.msra.mxu0 0.0
    %907 = vmatprep.subr.mxu0 0.0
    %908 = vmatpush1.xpose.msra.mxu0 0.0
    %909 = vmatprep.subr.mxu0 0.0
    %910 = vmatpush1.xpose.msra.mxu0 0.0
    %911 = vmatprep.subr.mxu0 0.0
    %912 = vmatpush1.xpose.msra.mxu0 0.0
    %913 = vmatprep.subr.mxu0 0.0
    %914 = vmatpush1.xpose.msra.mxu0 0.0
    %915 = vmatprep.subr.mxu0 0.0
    %916 = vmatpush1.xpose.msra.mxu0 0.0
    %917 = vmatprep.subr.mxu0 0.0
    %918 = vmatpush1.xpose.msra.mxu0 0.0
    %919 = vmatprep.subr.mxu0 0.0
    %920 = vmatpush1.xpose.msra.mxu0 0.0
    %921 = vmatprep.subr.mxu0 0.0
    %922 = vmatpush1.xpose.msra.mxu0 0.0
    %923 = vmatprep.subr.mxu0 0.0
    %924 = vmatpush1.xpose.msra.mxu0 0.0
    %925 = vmatprep.subr.mxu0 0.0
    %926 = vmatpush1.xpose.msra.mxu0 0.0
    %927 = vmatprep.subr.mxu0 0.0
    %928 = vmatpush1.xpose.msra.mxu0 0.0
    %929 = vmatprep.subr.mxu0 0.0
    %930 = vmatpush1.xpose.msra.mxu0 0.0
    %931 = vmatprep.subr.mxu0 0.0
    %932 = vmatpush1.xpose.msra.mxu0 0.0
    %933 = vmatprep.subr.mxu0 0.0
    %934 = vmatpush1.xpose.msra.mxu0 0.0
    %935 = vmatprep.subr.mxu0 0.0
    %936 = vmatpush1.xpose.msra.mxu0 0.0
    %937 = vmatprep.subr.mxu0 0.0
    %938 = vmatpush1.xpose.msra.mxu0 0.0
    %939 = vmatprep.subr.mxu0 0.0
    %940 = vmatpush1.xpose.msra.mxu0 0.0
    %941 = vmatprep.subr.mxu0 0.0
    %942 = vmatpush1.xpose.msra.mxu0 0.0
    %943 = vmatprep.subr.mxu0 0.0
    %944 = vmatpush1.xpose.msra.mxu0 0.0
    %945 = vmatprep.subr.mxu0 0.0
    %946 = vmatpush1.xpose.msra.mxu0 0.0
    %947 = vmatprep.subr.mxu0 0.0
    %948 = vmatpush1.xpose.msra.mxu0 0.0
    %949 = vmatprep.subr.mxu0 0.0
    %950 = vmatpush1.xpose.msra.mxu0 0.0
    %951 = vmatprep.subr.mxu0 0.0
    %952 = vmatpush1.xpose.msra.mxu0 0.0
    %953 = vmatprep.subr.mxu0 0.0
    %954 = vmatpush1.xpose.msra.mxu0 0.0
    %955 = vmatprep.subr.mxu0 0.0
    %956 = vmatpush1.xpose.msra.mxu0 0.0
    %957 = vmatprep.subr.mxu0 0.0
    %958 = vmatpush1.xpose.msra.mxu0 0.0
    %959 = vmatprep.subr.mxu0 0.0
    %960 = vmatpush1.xpose.msra.mxu0 0.0
    %961 = vmatprep.mubr.f32.mxu0 0.0
    %962 = vmatmul.mubr.f32.gmra.mrb[0].mxu0 %v246
    %v963 = vpop.f32.mrb[0].mxu0
    %v964 = vadd.f32 %v106, %v963
    %v965 = vpop.f32.mrb[0].mxu0
    %966 = vmatprep.mubr.f32.mxu0 0.0
    %967 = vmatmul.mubr.f32.gmra.mrb[0].mxu0 %v249
    %v968 = vpop.f32.mrb[0].mxu0
    %v969 = vadd.f32 %v107, %v968
    %v970 = vpop.f32.mrb[0].mxu0
    %971 = vdwg.mxu0
    %v972 = vsel %vm330, %v964, -inf
    %973 = vmax.xlane.f32.xlu0 %v972
    %v974 = vpop.xlane.xlu0 %973
    %v975 = vsel %vm330, %v969, -inf
    %976 = vmax.xlane.f32.xlu0 %v975
    %v977 = vpop.xlane.xlu0 %976
    %v978 = vsub.f32 %v964, %v974
    %v979 = vsub.f32 %v969, %v977
    %v980 = vmul.f32 %v978, 1.442695
    %v981 = vpow.pop %v980
    %v982 = vmul.f32 %v979, 1.442695
    %v983 = vpow.pop %v982
    %v984 = vsel %vm330, %v981, 0.0
    %985 = vadd.xlane.f32.xlu0 %v984
    %v986 = vpop.xlane.xlu0 %985
    %v987 = vsel %vm330, %v983, 0.0
    %988 = vadd.xlane.f32.xlu0 %v987
    %v989 = vpop.xlane.xlu0 %988
    %v990 = vrcp.pop %v986
    %v991 = vrcp.pop %v989
    %v992 = vmul.f32 %v981, %v990
    %v993 = vmul.f32 %v983, %v991
    %994 = vrot.lane.b32.xlu0 %v881, 64
    %v995 = vpop.permute.xlu0 %994
    %v997 = vmul.f32 %v204, %v995
    %v998 = vmul.f32 %v206, %v995
    %1001 = vrot.lane.b32.xlu0 %v997, 64
    %v1002 = vpop.permute.xlu0 %1001
    %1003 = vrot.lane.b32.xlu0 %v998, 64
    %v1004 = vpop.permute.xlu0 %1003
    %v1008 = vsel %vm330, %v992, 0
    %v1011 = vsel %vm330, %v993, 0
    %1013 = vmatprep.subr.mxu0 0.0
    %1014 = vmatpush1.msra.mxu0 %v1002
    %1015 = vmatprep.subr.mxu0 0.0
    %1016 = vmatpush1.msra.mxu0 %v1004
    %1017 = vmatprep.subr.mxu0 0.0
    %1018 = vmatpush1.msra.mxu0 0.0
    %1019 = vmatprep.subr.mxu0 0.0
    %1020 = vmatpush1.msra.mxu0 0.0
    %1021 = vmatprep.subr.mxu0 0.0
    %1022 = vmatpush1.msra.mxu0 0.0
    %1023 = vmatprep.subr.mxu0 0.0
    %1024 = vmatpush1.msra.mxu0 0.0
    %1025 = vmatprep.subr.mxu0 0.0
    %1026 = vmatpush1.msra.mxu0 0.0
    %1027 = vmatprep.subr.mxu0 0.0
    %1028 = vmatpush1.msra.mxu0 0.0
    %1029 = vmatprep.subr.mxu0 0.0
    %1030 = vmatpush1.msra.mxu0 0.0
    %1031 = vmatprep.subr.mxu0 0.0
    %1032 = vmatpush1.msra.mxu0 0.0
    %1033 = vmatprep.subr.mxu0 0.0
    %1034 = vmatpush1.msra.mxu0 0.0
    %1035 = vmatprep.subr.mxu0 0.0
    %1036 = vmatpush1.msra.mxu0 0.0
    %1037 = vmatprep.subr.mxu0 0.0
    %1038 = vmatpush1.msra.mxu0 0.0
    %1039 = vmatprep.subr.mxu0 0.0
    %1040 = vmatpush1.msra.mxu0 0.0
    %1041 = vmatprep.subr.mxu0 0.0
    %1042 = vmatpush1.msra.mxu0 0.0
    %1043 = vmatprep.subr.mxu0 0.0
    %1044 = vmatpush1.msra.mxu0 0.0
    %1045 = vmatprep.subr.mxu0 0.0
    %1046 = vmatpush1.msra.mxu0 0.0
    %1047 = vmatprep.subr.mxu0 0.0
    %1048 = vmatpush1.msra.mxu0 0.0
    %1049 = vmatprep.subr.mxu0 0.0
    %1050 = vmatpush1.msra.mxu0 0.0
    %1051 = vmatprep.subr.mxu0 0.0
    %1052 = vmatpush1.msra.mxu0 0.0
    %1053 = vmatprep.subr.mxu0 0.0
    %1054 = vmatpush1.msra.mxu0 0.0
    %1055 = vmatprep.subr.mxu0 0.0
    %1056 = vmatpush1.msra.mxu0 0.0
    %1057 = vmatprep.subr.mxu0 0.0
    %1058 = vmatpush1.msra.mxu0 0.0
    %1059 = vmatprep.subr.mxu0 0.0
    %1060 = vmatpush1.msra.mxu0 0.0
    %1061 = vmatprep.subr.mxu0 0.0
    %1062 = vmatpush1.msra.mxu0 0.0
    %1063 = vmatprep.subr.mxu0 0.0
    %1064 = vmatpush1.msra.mxu0 0.0
    %1065 = vmatprep.subr.mxu0 0.0
    %1066 = vmatpush1.msra.mxu0 0.0
    %1067 = vmatprep.subr.mxu0 0.0
    %1068 = vmatpush1.msra.mxu0 0.0
    %1069 = vmatprep.subr.mxu0 0.0
    %1070 = vmatpush1.msra.mxu0 0.0
    %1071 = vmatprep.subr.mxu0 0.0
    %1072 = vmatpush1.msra.mxu0 0.0
    %1073 = vmatprep.subr.mxu0 0.0
    %1074 = vmatpush1.msra.mxu0 0.0
    %1075 = vmatprep.subr.mxu0 0.0
    %1076 = vmatpush1.msra.mxu0 0.0
    %1077 = vmatprep.mubr.f32.mxu0 0.0
    %1078 = vmatmul.mubr.f32.gmra.mrb[0].mxu0 %v1008
    %v1079 = vpop.f32.mrb[0].mxu0
    %v1080 = vadd.f32 0.0, %v1079
    %v1081 = vpop.f32.mrb[0].mxu0
    %1082 = vmatprep.mubr.f32.mxu0 0.0
    %1083 = vmatmul.mubr.f32.gmra.mrb[0].mxu0 %v1011
    %v1084 = vpop.f32.mrb[0].mxu0
    %v1085 = vadd.f32 0.0, %v1084
    %v1086 = vpop.f32.mrb[0].mxu0
    %1087 = vdwg.mxu0
    %v1088 = vadd.f32 %v873, %v1080
    %v1089 = vadd.f32 %v874, %v1085
    %v1090 = vld [vmem:[#allocation7] sm:$0xff]
    %v1091 = vld [vmem:[#allocation7 + $0x8] sm:$0xff]
    %v1092 = vld [vmem:[#allocation7 + $0x10] sm:$0xff]
    %v1093 = vld [vmem:[#allocation7 + $0x18] sm:$0xff]
    %v1095 = vsel %vm116, %v1088, 0
    %v1098 = vsel %vm116, %v1089, 0
    %1100 = vmatprep.subr.mxu0 0.0
    %1101 = vmatpush1.msra.mxu0 %v1090
    %1102 = vmatprep.subr.mxu0 0.0
    %1103 = vmatpush1.msra.mxu0 %v1091
    %1104 = vmatprep.subr.mxu0 0.0
    %1105 = vmatpush1.msra.mxu0 %v1092
    %1106 = vmatprep.subr.mxu0 0.0
    %1107 = vmatpush1.msra.mxu0 %v1093
    %1108 = vmatprep.subr.mxu0 0.0
    %1109 = vmatpush1.msra.mxu0 0.0
    %1110 = vmatprep.subr.mxu0 0.0
    %1111 = vmatpush1.msra.mxu0 0.0
    %1112 = vmatprep.subr.mxu0 0.0
    %1113 = vmatpush1.msra.mxu0 0.0
    %1114 = vmatprep.subr.mxu0 0.0
    %1115 = vmatpush1.msra.mxu0 0.0
    %1116 = vmatprep.subr.mxu0 0.0
    %1117 = vmatpush1.msra.mxu0 0.0
    %1118 = vmatprep.subr.mxu0 0.0
    %1119 = vmatpush1.msra.mxu0 0.0
    %1120 = vmatprep.subr.mxu0 0.0
    %1121 = vmatpush1.msra.mxu0 0.0
    %1122 = vmatprep.subr.mxu0 0.0
    %1123 = vmatpush1.msra.mxu0 0.0
    %1124 = vmatprep.subr.mxu0 0.0
    %1125 = vmatpush1.msra.mxu0 0.0
    %1126 = vmatprep.subr.mxu0 0.0
    %1127 = vmatpush1.msra.mxu0 0.0
    %1128 = vmatprep.subr.mxu0 0.0
    %1129 = vmatpush1.msra.mxu0 0.0
    %1130 = vmatprep.subr.mxu0 0.0
    %1131 = vmatpush1.msra.mxu0 0.0
    %1132 = vmatprep.subr.mxu0 0.0
    %1133 = vmatpush1.msra.mxu0 0.0
    %1134 = vmatprep.subr.mxu0 0.0
    %1135 = vmatpush1.msra.mxu0 0.0
    %1136 = vmatprep.subr.mxu0 0.0
    %1137 = vmatpush1.msra.mxu0 0.0
    %1138 = vmatprep.subr.mxu0 0.0
    %1139 = vmatpush1.msra.mxu0 0.0
    %1140 = vmatprep.subr.mxu0 0.0
    %1141 = vmatpush1.msra.mxu0 0.0
    %1142 = vmatprep.subr.mxu0 0.0
    %1143 = vmatpush1.msra.mxu0 0.0
    %1144 = vmatprep.subr.mxu0 0.0
    %1145 = vmatpush1.msra.mxu0 0.0
    %1146 = vmatprep.subr.mxu0 0.0
    %1147 = vmatpush1.msra.mxu0 0.0
    %1148 = vmatprep.subr.mxu0 0.0
    %1149 = vmatpush1.msra.mxu0 0.0
    %1150 = vmatprep.subr.mxu0 0.0
    %1151 = vmatpush1.msra.mxu0 0.0
    %1152 = vmatprep.subr.mxu0 0.0
    %1153 = vmatpush1.msra.mxu0 0.0
    %1154 = vmatprep.subr.mxu0 0.0
    %1155 = vmatpush1.msra.mxu0 0.0
    %1156 = vmatprep.subr.mxu0 0.0
    %1157 = vmatpush1.msra.mxu0 0.0
    %1158 = vmatprep.subr.mxu0 0.0
    %1159 = vmatpush1.msra.mxu0 0.0
    %1160 = vmatprep.subr.mxu0 0.0
    %1161 = vmatpush1.msra.mxu0 0.0
    %1162 = vmatprep.subr.mxu0 0.0
    %1163 = vmatpush1.msra.mxu0 0.0
    %1164 = vmatprep.mubr.f32.mxu0 0.0
    %1165 = vmatmul.mubr.f32.gmra.mrb[0].mxu0 %v1095
    %v1166 = vpop.f32.mrb[0].mxu0
    %v1167 = vadd.f32 0.0, %v1166
    %v1168 = vpop.f32.mrb[0].mxu0
    %1169 = vmatprep.mubr.f32.mxu0 0.0
    %1170 = vmatmul.mubr.f32.gmra.mrb[0].mxu0 %v1098
    %v1171 = vpop.f32.mrb[0].mxu0
    %v1172 = vadd.f32 0.0, %v1171
    %v1173 = vpop.f32.mrb[0].mxu0
    %1174 = vdwg.mxu0
    %v1175 = vadd.f32 %v104, %v1167
    %v1176 = vadd.f32 %v105, %v1172
    %v1177 = vld [vmem:[#allocation10] sm:$0xff]
    %v1178 = vld [vmem:[#allocation10 + $0x8] sm:$0xff]
    %v1179 = vld [vmem:[#allocation10 + $0x10] sm:$0xff]
    %v1180 = vld [vmem:[#allocation10 + $0x18] sm:$0xff]
    %v1181 = vld [vmem:[%s9] sm:$0x1]
    %v1183 = vlaneseq
    %v1184 = vshrl.u32 %v1183, 7
    %v1185 = vsub.s32 0, %v1184
    %v1186 = vrot.slane %v1181, %v1185
    %v1189 = vsel %vm116, %v1175, 0
    %v1192 = vsel %vm116, %v1176, 0
    %1194 = vmatprep.subr.mxu0 0.0
    %1195 = vmatpush1.msra.mxu0 %v1177
    %1196 = vmatprep.subr.mxu0 0.0
    %1197 = vmatpush1.msra.mxu0 %v1178
    %1198 = vmatprep.subr.mxu0 0.0
    %1199 = vmatpush1.msra.mxu0 %v1179
    %1200 = vmatprep.subr.mxu0 0.0
    %1201 = vmatpush1.msra.mxu0 %v1180
    %1202 = vmatprep.subr.mxu0 0.0
    %1203 = vmatpush1.msra.mxu0 0.0
    %1204 = vmatprep.subr.mxu0 0.0
    %1205 = vmatpush1.msra.mxu0 0.0
    %1206 = vmatprep.subr.mxu0 0.0
    %1207 = vmatpush1.msra.mxu0 0.0
    %1208 = vmatprep.subr.mxu0 0.0
    %1209 = vmatpush1.msra.mxu0 0.0
    %1210 = vmatprep.subr.mxu0 0.0
    %1211 = vmatpush1.msra.mxu0 0.0
    %1212 = vmatprep.subr.mxu0 0.0
    %1213 = vmatpush1.msra.mxu0 0.0
    %1214 = vmatprep.subr.mxu0 0.0
    %1215 = vmatpush1.msra.mxu0 0.0
    %1216 = vmatprep.subr.mxu0 0.0
    %1217 = vmatpush1.msra.mxu0 0.0
    %1218 = vmatprep.subr.mxu0 0.0
    %1219 = vmatpush1.msra.mxu0 0.0
    %1220 = vmatprep.subr.mxu0 0.0
    %1221 = vmatpush1.msra.mxu0 0.0
    %1222 = vmatprep.subr.mxu0 0.0
    %1223 = vmatpush1.msra.mxu0 0.0
    %1224 = vmatprep.subr.mxu0 0.0
    %1225 = vmatpush1.msra.mxu0 0.0
    %1226 = vmatprep.subr.mxu0 0.0
    %1227 = vmatpush1.msra.mxu0 0.0
    %1228 = vmatprep.subr.mxu0 0.0
    %1229 = vmatpush1.msra.mxu0 0.0
    %1230 = vmatprep.subr.mxu0 0.0
    %1231 = vmatpush1.msra.mxu0 0.0
    %1232 = vmatprep.subr.mxu0 0.0
    %1233 = vmatpush1.msra.mxu0 0.0
    %1234 = vmatprep.subr.mxu0 0.0
    %1235 = vmatpush1.msra.mxu0 0.0
    %1236 = vmatprep.subr.mxu0 0.0
    %1237 = vmatpush1.msra.mxu0 0.0
    %1238 = vmatprep.subr.mxu0 0.0
    %1239 = vmatpush1.msra.mxu0 0.0
    %1240 = vmatprep.subr.mxu0 0.0
    %1241 = vmatpush1.msra.mxu0 0.0
    %1242 = vmatprep.subr.mxu0 0.0
    %1243 = vmatpush1.msra.mxu0 0.0
    %1244 = vmatprep.subr.mxu0 0.0
    %1245 = vmatpush1.msra.mxu0 0.0
    %1246 = vmatprep.subr.mxu0 0.0
    %1247 = vmatpush1.msra.mxu0 0.0
    %1248 = vmatprep.subr.mxu0 0.0
    %1249 = vmatpush1.msra.mxu0 0.0
    %1250 = vmatprep.subr.mxu0 0.0
    %1251 = vmatpush1.msra.mxu0 0.0
    %1252 = vmatprep.subr.mxu0 0.0
    %1253 = vmatpush1.msra.mxu0 0.0
    %1254 = vmatprep.subr.mxu0 0.0
    %1255 = vmatpush1.msra.mxu0 0.0
    %1256 = vmatprep.subr.mxu0 0.0
    %1257 = vmatpush1.msra.mxu0 0.0
    %1258 = vmatprep.mubr.f32.mxu0 0.0
    %1259 = vmatmul.mubr.f32.gmra.mrb[0].mxu0 %v1189
    %v1260 = vpop.f32.mrb[0].mxu0
    %v1261 = vadd.f32 %v1186, %v1260
    %v1262 = vpop.f32.mrb[0].mxu0
    %1263 = vmatprep.mubr.f32.mxu0 0.0
    %1264 = vmatmul.mubr.f32.gmra.mrb[0].mxu0 %v1192
    %v1265 = vpop.f32.mrb[0].mxu0
    %v1266 = vadd.f32 %v1186, %v1265
    %v1267 = vpop.f32.mrb[0].mxu0
    %1268 = vdwg.mxu0
    %v1269 = vld [vmem:[#allocation8] sm:$0xff]
    %v1270 = vld [vmem:[#allocation8 + $0x8] sm:$0xff]
    %v1271 = vld [vmem:[#allocation8 + $0x10] sm:$0xff]
    %v1272 = vld [vmem:[#allocation8 + $0x18] sm:$0xff]
    %1273 = vmatprep.subr.mxu0 0.0
    %1274 = vmatpush1.msra.mxu0 %v1269
    %1275 = vmatprep.subr.mxu0 0.0
    %1276 = vmatpush1.msra.mxu0 %v1270
    %1277 = vmatprep.subr.mxu0 0.0
    %1278 = vmatpush1.msra.mxu0 %v1271
    %1279 = vmatprep.subr.mxu0 0.0
    %1280 = vmatpush1.msra.mxu0 %v1272
    %1281 = vmatprep.subr.mxu0 0.0
    %1282 = vmatpush1.msra.mxu0 0.0
    %1283 = vmatprep.subr.mxu0 0.0
    %1284 = vmatpush1.msra.mxu0 0.0
    %1285 = vmatprep.subr.mxu0 0.0
    %1286 = vmatpush1.msra.mxu0 0.0
    %1287 = vmatprep.subr.mxu0 0.0
    %1288 = vmatpush1.msra.mxu0 0.0
    %1289 = vmatprep.subr.mxu0 0.0
    %1290 = vmatpush1.msra.mxu0 0.0
    %1291 = vmatprep.subr.mxu0 0.0
    %1292 = vmatpush1.msra.mxu0 0.0
    %1293 = vmatprep.subr.mxu0 0.0
    %1294 = vmatpush1.msra.mxu0 0.0
    %1295 = vmatprep.subr.mxu0 0.0
    %1296 = vmatpush1.msra.mxu0 0.0
    %1297 = vmatprep.subr.mxu0 0.0
    %1298 = vmatpush1.msra.mxu0 0.0
    %1299 = vmatprep.subr.mxu0 0.0
    %1300 = vmatpush1.msra.mxu0 0.0
    %1301 = vmatprep.subr.mxu0 0.0
    %1302 = vmatpush1.msra.mxu0 0.0
    %1303 = vmatprep.subr.mxu0 0.0
    %1304 = vmatpush1.msra.mxu0 0.0
    %1305 = vmatprep.subr.mxu0 0.0
    %1306 = vmatpush1.msra.mxu0 0.0
    %1307 = vmatprep.subr.mxu0 0.0
    %1308 = vmatpush1.msra.mxu0 0.0
    %1309 = vmatprep.subr.mxu0 0.0
    %1310 = vmatpush1.msra.mxu0 0.0
    %1311 = vmatprep.subr.mxu0 0.0
    %1312 = vmatpush1.msra.mxu0 0.0
    %1313 = vmatprep.subr.mxu0 0.0
    %1314 = vmatpush1.msra.mxu0 0.0
    %1315 = vmatprep.subr.mxu0 0.0
    %1316 = vmatpush1.msra.mxu0 0.0
    %1317 = vmatprep.subr.mxu0 0.0
    %1318 = vmatpush1.msra.mxu0 0.0
    %1319 = vmatprep.subr.mxu0 0.0
    %1320 = vmatpush1.msra.mxu0 0.0
    %1321 = vmatprep.subr.mxu0 0.0
    %1322 = vmatpush1.msra.mxu0 0.0
    %1323 = vmatprep.subr.mxu0 0.0
    %1324 = vmatpush1.msra.mxu0 0.0
    %1325 = vmatprep.subr.mxu0 0.0
    %1326 = vmatpush1.msra.mxu0 0.0
    %1327 = vmatprep.subr.mxu0 0.0
    %1328 = vmatpush1.msra.mxu0 0.0
    %1329 = vmatprep.subr.mxu0 0.0
    %1330 = vmatpush1.msra.mxu0 0.0
    %1331 = vmatprep.subr.mxu0 0.0
    %1332 = vmatpush1.msra.mxu0 0.0
    %1333 = vmatprep.subr.mxu0 0.0
    %1334 = vmatpush1.msra.mxu0 0.0
    %1335 = vmatprep.subr.mxu0 0.0
    %1336 = vmatpush1.msra.mxu0 0.0
    %1337 = vmatprep.mubr.f32.mxu0 0.0
    %1338 = vmatmul.mubr.f32.gmra.mrb[0].mxu0 %v1189
    %v1339 = vpop.f32.mrb[0].mxu0
    %v1340 = vadd.f32 0.0, %v1339
    %v1341 = vpop.f32.mrb[0].mxu0
    %1342 = vmatprep.mubr.f32.mxu0 0.0
    %1343 = vmatmul.mubr.f32.gmra.mrb[0].mxu0 %v1192
    %v1344 = vpop.f32.mrb[0].mxu0
    %v1345 = vadd.f32 0.0, %v1344
    %v1346 = vpop.f32.mrb[0].mxu0
    %1347 = vdwg.mxu0
    %v1348 = vxor.u32 %v1340, 2147483648
    %v1349 = vxor.u32 %v1345, 2147483648
    %v1350 = vmul.f32 %v1348, 1.442695
    %v1351 = vpow.pop %v1350
    %v1352 = vmul.f32 %v1349, 1.442695
    %v1353 = vpow.pop %v1352
    %v1354 = vadd.f32 %v1351, 1.0
    %v1355 = vadd.f32 %v1353, 1.0
    %v1356 = vrcp.pop %v1354
    %v1357 = vmul.f32 1.0, %v1356
    %v1358 = vrcp.pop %v1355
    %v1359 = vmul.f32 1.0, %v1358
    %v1360 = vmul.f32 %v1340, %v1357
    %v1361 = vmul.f32 %v1345, %v1359
    %1364 = vrot.lane.b32.xlu0 %v1360, 64
    %v1365 = vpop.permute.xlu0 %1364
    %1366 = vrot.lane.b32.xlu0 %v1361, 64
    %v1367 = vpop.permute.xlu0 %1366
    %v1370 = vmul.f32 %v1340, %v1365
    %v1371 = vmul.f32 %v1345, %v1367
    %v1372 = vld [vmem:[%s7] sm:$0xff]
    %v1373 = vld [vmem:[%s7 + $0x8] sm:$0xff]
    %v1374 = vld [vmem:[%s7 + $0x10] sm:$0xff]
    %v1375 = vld [vmem:[%s7 + $0x18] sm:$0xff]
    %v1376 = vld [vmem:[%s7 + $0x20] sm:$0xff]
    %v1377 = vld [vmem:[%s7 + $0x28] sm:$0xff]
    %v1378 = vld [vmem:[%s7 + $0x30] sm:$0xff]
    %v1379 = vld [vmem:[%s7 + $0x38] sm:$0xff]
    %vm1380 = vcmask 523264
    %v1382 = vsel %vm1380, %v1370, 0
    %v1385 = vsel %vm1380, %v1371, 0
    %1387 = vmatprep.subr.mxu0 0.0
    %1388 = vmatpush1.msra.mxu0 %v1372
    %1389 = vmatprep.subr.mxu0 0.0
    %1390 = vmatpush1.msra.mxu0 %v1373
    %1391 = vmatprep.subr.mxu0 0.0
    %1392 = vmatpush1.msra.mxu0 %v1374
    %1393 = vmatprep.subr.mxu0 0.0
    %1394 = vmatpush1.msra.mxu0 %v1375
    %1395 = vmatprep.subr.mxu0 0.0
    %1396 = vmatpush1.msra.mxu0 %v1376
    %1397 = vmatprep.subr.mxu0 0.0
    %1398 = vmatpush1.msra.mxu0 %v1377
    %1399 = vmatprep.subr.mxu0 0.0
    %1400 = vmatpush1.msra.mxu0 %v1378
    %1401 = vmatprep.subr.mxu0 0.0
    %1402 = vmatpush1.msra.mxu0 %v1379
    %1403 = vmatprep.subr.mxu0 0.0
    %1404 = vmatpush1.msra.mxu0 0.0
    %1405 = vmatprep.subr.mxu0 0.0
    %1406 = vmatpush1.msra.mxu0 0.0
    %1407 = vmatprep.subr.mxu0 0.0
    %1408 = vmatpush1.msra.mxu0 0.0
    %1409 = vmatprep.subr.mxu0 0.0
    %1410 = vmatpush1.msra.mxu0 0.0
    %1411 = vmatprep.subr.mxu0 0.0
    %1412 = vmatpush1.msra.mxu0 0.0
    %1413 = vmatprep.subr.mxu0 0.0
    %1414 = vmatpush1.msra.mxu0 0.0
    %1415 = vmatprep.subr.mxu0 0.0
    %1416 = vmatpush1.msra.mxu0 0.0
    %1417 = vmatprep.subr.mxu0 0.0
    %1418 = vmatpush1.msra.mxu0 0.0
    %1419 = vmatprep.subr.mxu0 0.0
    %1420 = vmatpush1.msra.mxu0 0.0
    %1421 = vmatprep.subr.mxu0 0.0
    %1422 = vmatpush1.msra.mxu0 0.0
    %1423 = vmatprep.subr.mxu0 0.0
    %1424 = vmatpush1.msra.mxu0 0.0
    %1425 = vmatprep.subr.mxu0 0.0
    %1426 = vmatpush1.msra.mxu0 0.0
    %1427 = vmatprep.subr.mxu0 0.0
    %1428 = vmatpush1.msra.mxu0 0.0
    %1429 = vmatprep.subr.mxu0 0.0
    %1430 = vmatpush1.msra.mxu0 0.0
    %1431 = vmatprep.subr.mxu0 0.0
    %1432 = vmatpush1.msra.mxu0 0.0
    %1433 = vmatprep.subr.mxu0 0.0
    %1434 = vmatpush1.msra.mxu0 0.0
    %1435 = vmatprep.subr.mxu0 0.0
    %1436 = vmatpush1.msra.mxu0 0.0
    %1437 = vmatprep.subr.mxu0 0.0
    %1438 = vmatpush1.msra.mxu0 0.0
    %1439 = vmatprep.subr.mxu0 0.0
    %1440 = vmatpush1.msra.mxu0 0.0
    %1441 = vmatprep.subr.mxu0 0.0
    %1442 = vmatpush1.msra.mxu0 0.0
    %1443 = vmatprep.subr.mxu0 0.0
    %1444 = vmatpush1.msra.mxu0 0.0
    %1445 = vmatprep.subr.mxu0 0.0
    %1446 = vmatpush1.msra.mxu0 0.0
    %1447 = vmatprep.subr.mxu0 0.0
    %1448 = vmatpush1.msra.mxu0 0.0
    %1449 = vmatprep.subr.mxu0 0.0
    %1450 = vmatpush1.msra.mxu0 0.0
    %1451 = vmatprep.mubr.f32.mxu0 0.0
    %1452 = vmatmul.mubr.f32.gmra.mrb[0].mxu0 %v1382
    %v1453 = vpop.f32.mrb[0].mxu0
    %v1454 = vadd.f32 0.0, %v1453
    %v1455 = vpop.f32.mrb[0].mxu0
    %1456 = vmatprep.mubr.f32.mxu0 0.0
    %1457 = vmatmul.mubr.f32.gmra.mrb[0].mxu0 %v1385
    %v1458 = vpop.f32.mrb[0].mxu0
    %v1459 = vadd.f32 0.0, %v1458
    %v1460 = vpop.f32.mrb[0].mxu0
    %1461 = vdwg.mxu0
    %v1462 = vadd.f32 %v1261, %v1454
    %v1463 = vadd.f32 %v1266, %v1459
    %1464 = vst.msk [vmem:[#allocation11] sm:$0xff] %vm116, %v1462
    %1465 = vst.msk [vmem:[#allocation11 + $0x8] sm:$0xff] %vm116, %v1463
    // Predicated region
    $region62: #{tpu_custom_call.1} parent=1 // pred_check
      _
    $region63: #{tpu_custom_call.1} parent=1 // pred_check_branch
      %1467 = sbr.rel (0) target = $region65
    $region64: #{tpu_custom_call.1} parent=1 // pred_region
      %s1469 = ssub.s32 256, 256
      %1470 = vsyncadd [#allocation4], %s1469
      %s1471 = sshll.u32 [#allocation11], 4
      %s1472 = int_to_ptr.vmem [resolvable:$true] %s1471
      %1477 = dma.vmem_to_hbm [thread:$0]  %s1472, 256, %s10, [#allocation4], 128, 128, 8
    $region65: #{tpu_custom_call.1} parent=1 // pred_fallthru
      _
    // Predicated region
    $region66: #{tpu_custom_call.1} parent=1 // pred_check
      _
    $region67: #{tpu_custom_call.1} parent=1 // pred_check_branch
      %1479 = sbr.rel (0) target = $region69
    $region68: #{tpu_custom_call.1} parent=1 // pred_region
      %1480 = dma.done [#allocation4], 256
    $region69: #{tpu_custom_call.1} parent=1 // pred_fallthru
      _
    %1481 = vsyncpa [#allocation3], 1
    %1482 = vsyncpa [#allocation6], 1
    %1483 = vsyncpa [#allocation9], 1
    %1484 = vsyncpa [#allocation4], 1

</llo_original>
